<compile_context>
chip_gen: v5e
topology: v5e:2x2
jax: 0.10.0
libtpu: 0.0.40
codegen_flags: <defaults>
</compile_context>

<pallas_src>
import jax
import jax.numpy as jnp
from jax.experimental import pallas as pl
from jax.experimental.pallas import tpu as pltpu


def _attention_kernel(xq_ref, xk_ref, wq_ref, wk_ref, wv_ref, wo_ref,
                      gin_ref, bout_ref, gout_ref, o_ref,
                      q_sc, m_sc, l_sc, acc_sc):
    """One (batch, q-tile, kv-tile) grid step.

    xq_ref : (tq, C)              query-side pixels (leading batch dim squeezed)
    xk_ref : (tk, C)              key/value-side pixels
    wq/wk/wv_ref : (heads, C, D)  per-head 1x1-conv weights (scale folded in Wq)
    wo_ref : (heads, D, C)        per-head output 1x1-conv weight
    gin/bout/gout_ref : (1, C)    RMSNorm gains (* sqrt(C)) and output bias
    o_ref  : (tq, C)
    scratch: q_sc (heads, tq, D), m_sc/l_sc (heads, tq, 1), acc_sc (heads, tq, D)
    """
    heads = wq_ref.shape[0]
    compute_dtype = q_sc.dtype
    approx_recip = compute_dtype != jnp.float32

    ki = pl.program_id(2)
    nk = pl.num_programs(2)

    g_in = gin_ref[...]        # hoist small loads out of the head loops
    g_out = gout_ref[...]

    def rmsnorm(t, g):  # t: (T, C) f32, g: (1, C) f32 already scaled by sqrt(C)
        ss = jnp.sum(t * t, axis=-1, keepdims=True)
        return t * jax.lax.rsqrt(jnp.maximum(ss, 1e-24)) * g

    # --- first kv step of this (batch, q-tile): project Q, reset softmax state ---
    @pl.when(ki == 0)
    def _init():
        xq_n = rmsnorm(xq_ref[...].astype(jnp.float32), g_in).astype(compute_dtype)
        for hh in range(heads):
            q_sc[hh] = jnp.dot(xq_n, wq_ref[hh],
                               preferred_element_type=jnp.float32).astype(compute_dtype)
        m_sc[...] = jnp.full(m_sc.shape, -jnp.inf, dtype=m_sc.dtype)
        l_sc[...] = jnp.zeros(l_sc.shape, dtype=l_sc.dtype)
        acc_sc[...] = jnp.zeros(acc_sc.shape, dtype=acc_sc.dtype)

    # --- current kv tile: RMSNorm + K/V projection, then online softmax per head ---
    # TODO(synk): K/V projection is recomputed for every q-tile (extra ~C/tq of the
    # attention flops); for very large C split the projection into its own pass.
    xk_n = rmsnorm(xk_ref[...].astype(jnp.float32), g_in).astype(compute_dtype)
    for hh in range(heads):
        k_h = jnp.dot(xk_n, wk_ref[hh],
                      preferred_element_type=jnp.float32).astype(compute_dtype)  # (tk, D)
        v_h = jnp.dot(xk_n, wv_ref[hh],
                      preferred_element_type=jnp.float32).astype(compute_dtype)  # (tk, D)
        # (tq, D) x (tk, D) contracting D -> (tq, tk); no explicit K transpose.
        sim = jax.lax.dot_general(q_sc[hh], k_h, (((1,), (1,)), ((), ())),
                                  preferred_element_type=jnp.float32)
        m_prev = m_sc[hh]                                            # (tq, 1)
        m_new = jnp.maximum(m_prev, jnp.max(sim, axis=-1, keepdims=True))
        alpha = jnp.exp(m_prev - m_new)                              # EUP
        p = jnp.exp(sim - m_new)                                     # (tq, tk) f32
        l_sc[hh] = alpha * l_sc[hh] + jnp.sum(p, axis=-1, keepdims=True)
        acc_sc[hh] = alpha * acc_sc[hh] + jnp.dot(
            p.astype(compute_dtype), v_h, preferred_element_type=jnp.float32)
        m_sc[hh] = m_new

    # --- last kv step: per-head output projection (accumulated), bias, RMSNorm ---
    @pl.when(ki == nk - 1)
    def _epilogue():
        out = jnp.broadcast_to(bout_ref[...], o_ref.shape).astype(jnp.float32)
        for hh in range(heads):
            inv_l = pl.reciprocal(l_sc[hh], approx=approx_recip)     # (tq, 1), EUP
            y_h = (acc_sc[hh] * inv_l).astype(compute_dtype)         # (tq, D)
            out = out + jnp.dot(y_h, wo_ref[hh], preferred_element_type=jnp.float32)
        out = rmsnorm(out, g_out)
        o_ref[...] = out.astype(o_ref.dtype)


def attention_pallas(x_nchw, w_qkv_conv, g_in, w_out_conv, b_out, g_out, *,
                     heads, dim_head, block_q=256, block_k=256,
                     compute_dtype=jnp.bfloat16):
    """x_nchw: (B, C, H, W) like the PyTorch module; returns (B, C, H, W)."""
    b, c, h, w = x_nchw.shape
    n = h * w
    hidden = heads * dim_head
    assert w_qkv_conv.shape == (3 * hidden, c)
    assert w_out_conv.shape == (c, hidden)

    tq = min(block_q, n)
    tk = min(block_k, n)
    assert n % tq == 0 and n % tk == 0, "H*W must be divisible by the tile sizes"
    assert tq % 8 == 0 and tk % 8 == 0

    # NCHW -> (B, N, C): pixels on sublanes, channels on lanes (1x1 convs = matmuls).
    # TODO(synk): the NCHW<->NHWC transposes are standalone HBM round trips; in a
    # real network keep activations NHWC (or fuse the transpose into neighbors).
    x = jnp.transpose(x_nchw, (0, 2, 3, 1)).reshape(b, n, c)

    scale = dim_head ** (-0.5)
    sqrt_c = float(c) ** 0.5
    wq, wk, wv = jnp.split(w_qkv_conv, 3, axis=0)            # each (hidden, C)

    def to_heads_cd(wm):                                     # (hidden, C) -> (heads, C, D)
        return jnp.transpose(wm.reshape(heads, dim_head, c), (0, 2, 1))

    wq_h = (to_heads_cd(wq) * scale).astype(compute_dtype)   # fold dim_head**-0.5 into Wq
    wk_h = to_heads_cd(wk).astype(compute_dtype)
    wv_h = to_heads_cd(wv).astype(compute_dtype)
    wo_h = jnp.transpose(w_out_conv).reshape(heads, dim_head, c).astype(compute_dtype)

    gin = (g_in.reshape(1, c) * sqrt_c).astype(jnp.float32)  # fold sqrt(C) into gains
    gout = (g_out.reshape(1, c) * sqrt_c).astype(jnp.float32)
    bout = b_out.reshape(1, c).astype(jnp.float32)

    grid = (b, n // tq, n // tk)
    itemsize = x.dtype.itemsize
    flops = b * (2 * n * c * hidden                          # q projection
                 + (n // tq) * 4 * n * c * hidden            # k/v projection per q tile
                 + 4 * n * n * hidden                        # q@k^T and p@v
                 + 2 * n * hidden * c)                       # output projection
    cost = pl.CostEstimate(
        flops=flops,
        transcendentals=b * heads * n * n,
        bytes_accessed=b * n * c * itemsize * (2 + n // tq))

    # TODO(synk): with C < 128 the elementwise/store epilogue uses masked vst; for
    # real model channel counts keep C a multiple of 128 (or pad) for lane-dense stores.
    out = pl.pallas_call(
        _attention_kernel,
        out_shape=jax.ShapeDtypeStruct((b, n, c), x.dtype),
        grid=grid,
        in_specs=[
            pl.BlockSpec((None, tq, c), lambda bi, qi, ki: (bi, qi, 0)),   # x for Q
            pl.BlockSpec((None, tk, c), lambda bi, qi, ki: (bi, ki, 0)),   # x for K/V
            pl.BlockSpec((heads, c, dim_head), lambda bi, qi, ki: (0, 0, 0)),
            pl.BlockSpec((heads, c, dim_head), lambda bi, qi, ki: (0, 0, 0)),
            pl.BlockSpec((heads, c, dim_head), lambda bi, qi, ki: (0, 0, 0)),
            pl.BlockSpec((heads, dim_head, c), lambda bi, qi, ki: (0, 0, 0)),
            pl.BlockSpec((1, c), lambda bi, qi, ki: (0, 0)),
            pl.BlockSpec((1, c), lambda bi, qi, ki: (0, 0)),
            pl.BlockSpec((1, c), lambda bi, qi, ki: (0, 0)),
        ],
        out_specs=pl.BlockSpec((None, tq, c), lambda bi, qi, ki: (bi, qi, 0)),
        scratch_shapes=[
            pltpu.VMEM((heads, tq, dim_head), compute_dtype),   # Q tiles (per head)
            pltpu.VMEM((heads, tq, 1), jnp.float32),            # running max m
            pltpu.VMEM((heads, tq, 1), jnp.float32),            # running denom l
            pltpu.VMEM((heads, tq, dim_head), jnp.float32),     # running numerator acc
        ],
        compiler_params=pltpu.CompilerParams(
            dimension_semantics=("parallel", "parallel", "arbitrary"),
            vmem_limit_bytes=48 * 1024 * 1024),
        cost_estimate=cost,
    )(x, x, wq_h, wk_h, wv_h, wo_h, gin, bout, gout)

    # (B, N, C) -> NCHW
    return jnp.transpose(out.reshape(b, h, w, c), (0, 3, 1, 2))


def attention_ref(x_nchw, w_qkv_conv, g_in, w_out_conv, b_out, g_out,
                  *, heads, dim_head):
    """Pure-JAX f32 reference mirroring the PyTorch forward, for verification."""
    b, c, h, w = x_nchw.shape
    n = h * w
    hidden = heads * dim_head
    scale = dim_head ** (-0.5)

    def rmsnorm(t, g):  # t: (B, N, C), g: (C,)
        nrm = jnp.sqrt(jnp.sum(t * t, axis=-1, keepdims=True))
        return t / jnp.maximum(nrm, 1e-12) * g * (c ** 0.5)

    x = jnp.transpose(x_nchw, (0, 2, 3, 1)).reshape(b, n, c)
    x = rmsnorm(x, g_in.reshape(c))
    qkv = x @ w_qkv_conv.T                                   # (B, N, 3*HID)
    q, k, v = jnp.split(qkv, 3, axis=-1)

    def split_heads(t):                                      # (B, N, HID) -> (B, Hd, N, D)
        return jnp.transpose(t.reshape(b, n, heads, dim_head), (0, 2, 1, 3))

    q, k, v = split_heads(q) * scale, split_heads(k), split_heads(v)
    sim = jnp.einsum('bhid,bhjd->bhij', q, k)
    sim = sim - jnp.max(sim, axis=-1, keepdims=True)
    attn = jax.nn.softmax(sim, axis=-1)
    y = jnp.einsum('bhij,bhjd->bhid', attn, v)               # (B, Hd, N, D)
    y = jnp.transpose(y, (0, 2, 1, 3)).reshape(b, n, hidden)
    out = y @ w_out_conv.T + b_out.reshape(1, 1, c)
    out = rmsnorm(out, g_out.reshape(c))
    return jnp.transpose(out.reshape(b, h, w, c), (0, 3, 1, 2))


if __name__ == "__main__":
    B, C, H, W = 2, 8, 16, 16          # N = H*W = 256 pixels
    HEADS, DIM_HEAD = 2, 16
    HIDDEN = HEADS * DIM_HEAD

    key = jax.random.PRNGKey(0)
    kx, k1, k2, k3 = jax.random.split(key, 4)

    x = jax.random.normal(kx, (B, C, H, W), dtype=jnp.float32)
    # Deterministic synthetic parameters (shapes match nn.Conv2d / RMSNorm init).
    w_qkv_conv = jax.random.normal(k1, (3 * HIDDEN, C), dtype=jnp.float32) * 0.1
    w_out_conv = jax.random.normal(k2, (C, HIDDEN), dtype=jnp.float32) * 0.1
    b_out = jax.random.normal(k3, (C,), dtype=jnp.float32) * 0.1
    g_in = jnp.ones((1, C, 1, 1), dtype=jnp.float32)         # RMSNorm.g init = ones
    g_out = jnp.ones((1, C, 1, 1), dtype=jnp.float32)

    ref = attention_ref(x, w_qkv_conv, g_in, w_out_conv, b_out, g_out,
                        heads=HEADS, dim_head=DIM_HEAD)

    # 1) f32 compute path with small tiles: exercises the multi-step online-softmax
    #    (kv grid axis, 4 steps) and must match the reference tightly.
    out_f32 = attention_pallas(x, w_qkv_conv, g_in, w_out_conv, b_out, g_out,
                               heads=HEADS, dim_head=DIM_HEAD,
                               block_q=64, block_k=64,
                               compute_dtype=jnp.float32)
    out_f32 = jax.block_until_ready(out_f32)
    assert out_f32.shape == (B, C, H, W)
    err32 = float(jnp.max(jnp.abs(out_f32 - ref)))
    assert jnp.allclose(out_f32, ref, atol=5e-4, rtol=5e-4), err32

    # 2) Default bf16 MXU-operand path (perf config, single kv step): looser tolerance.
    out_bf16 = attention_pallas(x, w_qkv_conv, g_in, w_out_conv, b_out, g_out,
                                heads=HEADS, dim_head=DIM_HEAD)
    out_bf16 = jax.block_until_ready(out_bf16)
    assert out_bf16.shape == (B, C, H, W)
    err16 = float(jnp.max(jnp.abs(out_bf16 - ref)))
    assert jnp.allclose(out_bf16, ref, atol=1e-1, rtol=1e-1), err16

    print("KERNEL_OK")
</pallas_src>

<mosaic_0001>
module attributes {stable_mosaic.version = 11 : i64} {
  func.func @_attention_kernel(%arg0: i32, %arg1: i32, %arg2: i32, %arg3: memref<1x64x8xf32, #tpu.memory_space<vmem>>, %arg4: memref<1x64x8xf32, #tpu.memory_space<vmem>>, %arg5: memref<2x8x16xf32, #tpu.memory_space<vmem>>, %arg6: memref<2x8x16xf32, #tpu.memory_space<vmem>>, %arg7: memref<2x8x16xf32, #tpu.memory_space<vmem>>, %arg8: memref<2x16x8xf32, #tpu.memory_space<vmem>>, %arg9: memref<1x8xf32, #tpu.memory_space<vmem>>, %arg10: memref<1x8xf32, #tpu.memory_space<vmem>>, %arg11: memref<1x8xf32, #tpu.memory_space<vmem>>, %arg12: memref<1x64x8xf32, #tpu.memory_space<vmem>>, %arg13: memref<2x64x16xf32, #tpu.memory_space<vmem>>, %arg14: memref<2x64x1xf32, #tpu.memory_space<vmem>>, %arg15: memref<2x64x1xf32, #tpu.memory_space<vmem>>, %arg16: memref<2x64x16xf32, #tpu.memory_space<vmem>>) attributes {dimension_semantics = [#tpu.dimension_semantics<parallel>, #tpu.dimension_semantics<parallel>, #tpu.dimension_semantics<arbitrary>], iteration_bounds = array<i64: 2, 4, 4>, scalar_prefetch = 0 : i64, scratch_operands = 4 : i64, tpu.core_type = #tpu.core_type<tc>, window_params = [{transform_indices = @transform_0, window_bounds = array<i64: 1, 64, 8>}, {transform_indices = @transform_1, window_bounds = array<i64: 1, 64, 8>}, {pipeline_mode = #tpu.pipeline_mode<synchronous>, transform_indices = @transform_2, window_bounds = array<i64: 2, 8, 16>}, {pipeline_mode = #tpu.pipeline_mode<synchronous>, transform_indices = @transform_3, window_bounds = array<i64: 2, 8, 16>}, {pipeline_mode = #tpu.pipeline_mode<synchronous>, transform_indices = @transform_4, window_bounds = array<i64: 2, 8, 16>}, {pipeline_mode = #tpu.pipeline_mode<synchronous>, transform_indices = @transform_5, window_bounds = array<i64: 2, 16, 8>}, {pipeline_mode = #tpu.pipeline_mode<synchronous>, transform_indices = @transform_6, window_bounds = array<i64: 1, 8>}, {pipeline_mode = #tpu.pipeline_mode<synchronous>, transform_indices = @transform_7, window_bounds = array<i64: 1, 8>}, {pipeline_mode = #tpu.pipeline_mode<synchronous>, transform_indices = @transform_8, window_bounds = array<i64: 1, 8>}, {transform_indices = @transform_9, window_bounds = array<i64: 1, 64, 8>}]} {
    %c0 = arith.constant 0 : index
    %c0_0 = arith.constant 0 : index
    %0 = vector.load %arg9[%c0, %c0_0] : memref<1x8xf32, #tpu.memory_space<vmem>>, vector<1x8xf32>
    %c0_1 = arith.constant 0 : index
    %c0_2 = arith.constant 0 : index
    %1 = vector.load %arg11[%c0_1, %c0_2] : memref<1x8xf32, #tpu.memory_space<vmem>>, vector<1x8xf32>
    %c0_i32 = arith.constant 0 : i32
    %2 = arith.cmpi eq, %arg2, %c0_i32 : i32
    %3 = arith.extui %2 : i1 to i32
    %c0_i32_3 = arith.constant 0 : i32
    %4 = arith.cmpi ne, %3, %c0_i32_3 : i32
    scf.if %4 {
      %c0_74 = arith.constant 0 : index
      %c0_75 = arith.constant 0 : index
      %c0_76 = arith.constant 0 : index
      %100 = vector.load %arg3[%c0_74, %c0_75, %c0_76] : memref<1x64x8xf32, #tpu.memory_space<vmem>>, vector<1x64x8xf32>
      %101 = vector.shape_cast %100 : vector<1x64x8xf32> to vector<64x8xf32>
      %102 = arith.mulf %101, %101 : vector<64x8xf32>
      %cst_77 = arith.constant dense<0.000000e+00> : vector<64xf32>
      %103 = vector.multi_reduction <add>, %102, %cst_77 [1] : vector<64x8xf32> to vector<64xf32>
      %104 = vector.shape_cast %103 : vector<64xf32> to vector<64x1xf32>
      %cst_78 = arith.constant 1.000000e-24 : f32
      %105 = vector.broadcast %cst_78 : f32 to vector<64x1xf32>
      %106 = arith.maximumf %104, %105 : vector<64x1xf32>
      %107 = math.rsqrt %106 : vector<64x1xf32>
      %108 = vector.broadcast %107 : vector<64x1xf32> to vector<64x8xf32>
      %109 = arith.mulf %101, %108 : vector<64x8xf32>
      %110 = vector.broadcast %0 : vector<1x8xf32> to vector<64x8xf32>
      %111 = arith.mulf %109, %110 : vector<64x8xf32>
      %c0_79 = arith.constant 0 : index
      %c0_80 = arith.constant 0 : index
      %c0_81 = arith.constant 0 : index
      %112 = vector.load %arg5[%c0_79, %c0_80, %c0_81] : memref<2x8x16xf32, #tpu.memory_space<vmem>>, vector<1x8x16xf32>
      %113 = vector.shape_cast %112 : vector<1x8x16xf32> to vector<8x16xf32>
      %cst_82 = arith.constant dense<0.000000e+00> : vector<64x16xf32>
      %114 = tpu.matmul %111, %113, %cst_82 {dimension_numbers = #tpu.dot_dimension_numbers<[1], [0], [0], [1], [0, 0, 1, 1], [], []>} : vector<64x8xf32>, vector<8x16xf32>, vector<64x16xf32> -> vector<64x16xf32>
      %c0_83 = arith.constant 0 : index
      %c0_84 = arith.constant 0 : index
      %c0_85 = arith.constant 0 : index
      %115 = vector.load %arg13[%c0_83, %c0_84, %c0_85] : memref<2x64x16xf32, #tpu.memory_space<vmem>>, vector<1x64x16xf32>
      %116 = vector.shape_cast %115 : vector<1x64x16xf32> to vector<64x16xf32>
      %117 = vector.shape_cast %114 : vector<64x16xf32> to vector<1x64x16xf32>
      tpu.vector_store %arg13[%c0_83, %c0_84, %c0_85], %117 {strides = array<i32>} : memref<2x64x16xf32, #tpu.memory_space<vmem>>, vector<1x64x16xf32>,
      %c1_86 = arith.constant 1 : index
      %c0_87 = arith.constant 0 : index
      %c0_88 = arith.constant 0 : index
      %118 = vector.load %arg5[%c1_86, %c0_87, %c0_88] : memref<2x8x16xf32, #tpu.memory_space<vmem>>, vector<1x8x16xf32>
      %119 = vector.shape_cast %118 : vector<1x8x16xf32> to vector<8x16xf32>
      %cst_89 = arith.constant dense<0.000000e+00> : vector<64x16xf32>
      %120 = tpu.matmul %111, %119, %cst_89 {dimension_numbers = #tpu.dot_dimension_numbers<[1], [0], [0], [1], [0, 0, 1, 1], [], []>} : vector<64x8xf32>, vector<8x16xf32>, vector<64x16xf32> -> vector<64x16xf32>
      %c1_90 = arith.constant 1 : index
      %c0_91 = arith.constant 0 : index
      %c0_92 = arith.constant 0 : index
      %121 = vector.load %arg13[%c1_90, %c0_91, %c0_92] : memref<2x64x16xf32, #tpu.memory_space<vmem>>, vector<1x64x16xf32>
      %122 = vector.shape_cast %121 : vector<1x64x16xf32> to vector<64x16xf32>
      %123 = vector.shape_cast %120 : vector<64x16xf32> to vector<1x64x16xf32>
      tpu.vector_store %arg13[%c1_90, %c0_91, %c0_92], %123 {strides = array<i32>} : memref<2x64x16xf32, #tpu.memory_space<vmem>>, vector<1x64x16xf32>,
      %cst_93 = arith.constant 0xFF800000 : f32
      %124 = vector.broadcast %cst_93 : f32 to vector<2x64x1xf32>
      %c0_94 = arith.constant 0 : index
      %c0_95 = arith.constant 0 : index
      %c0_96 = arith.constant 0 : index
      %125 = vector.load %arg14[%c0_94, %c0_95, %c0_96] : memref<2x64x1xf32, #tpu.memory_space<vmem>>, vector<2x64x1xf32>
      tpu.vector_store %arg14[%c0_94, %c0_95, %c0_96], %124 {strides = array<i32>} : memref<2x64x1xf32, #tpu.memory_space<vmem>>, vector<2x64x1xf32>,
      %cst_97 = arith.constant 0.000000e+00 : f32
      %126 = vector.broadcast %cst_97 : f32 to vector<2x64x1xf32>
      %c0_98 = arith.constant 0 : index
      %c0_99 = arith.constant 0 : index
      %c0_100 = arith.constant 0 : index
      %127 = vector.load %arg15[%c0_98, %c0_99, %c0_100] : memref<2x64x1xf32, #tpu.memory_space<vmem>>, vector<2x64x1xf32>
      tpu.vector_store %arg15[%c0_98, %c0_99, %c0_100], %126 {strides = array<i32>} : memref<2x64x1xf32, #tpu.memory_space<vmem>>, vector<2x64x1xf32>,
      %cst_101 = arith.constant 0.000000e+00 : f32
      %128 = vector.broadcast %cst_101 : f32 to vector<2x64x16xf32>
      %c0_102 = arith.constant 0 : index
      %c0_103 = arith.constant 0 : index
      %c0_104 = arith.constant 0 : index
      %129 = vector.load %arg16[%c0_102, %c0_103, %c0_104] : memref<2x64x16xf32, #tpu.memory_space<vmem>>, vector<2x64x16xf32>
      tpu.vector_store %arg16[%c0_102, %c0_103, %c0_104], %128 {strides = array<i32>} : memref<2x64x16xf32, #tpu.memory_space<vmem>>, vector<2x64x16xf32>,
    } else {
    }
    %c0_4 = arith.constant 0 : index
    %c0_5 = arith.constant 0 : index
    %c0_6 = arith.constant 0 : index
    %5 = vector.load %arg4[%c0_4, %c0_5, %c0_6] : memref<1x64x8xf32, #tpu.memory_space<vmem>>, vector<1x64x8xf32>
    %6 = vector.shape_cast %5 : vector<1x64x8xf32> to vector<64x8xf32>
    %7 = arith.mulf %6, %6 : vector<64x8xf32>
    %cst = arith.constant dense<0.000000e+00> : vector<64xf32>
    %8 = vector.multi_reduction <add>, %7, %cst [1] : vector<64x8xf32> to vector<64xf32>
    %9 = vector.shape_cast %8 : vector<64xf32> to vector<64x1xf32>
    %cst_7 = arith.constant 1.000000e-24 : f32
    %10 = vector.broadcast %cst_7 : f32 to vector<64x1xf32>
    %11 = arith.maximumf %9, %10 : vector<64x1xf32>
    %12 = math.rsqrt %11 : vector<64x1xf32>
    %13 = vector.broadcast %12 : vector<64x1xf32> to vector<64x8xf32>
    %14 = arith.mulf %6, %13 : vector<64x8xf32>
    %15 = vector.broadcast %0 : vector<1x8xf32> to vector<64x8xf32>
    %16 = arith.mulf %14, %15 : vector<64x8xf32>
    %c0_8 = arith.constant 0 : index
    %c0_9 = arith.constant 0 : index
    %c0_10 = arith.constant 0 : index
    %17 = vector.load %arg6[%c0_8, %c0_9, %c0_10] : memref<2x8x16xf32, #tpu.memory_space<vmem>>, vector<1x8x16xf32>
    %18 = vector.shape_cast %17 : vector<1x8x16xf32> to vector<8x16xf32>
    %cst_11 = arith.constant dense<0.000000e+00> : vector<64x16xf32>
    %19 = tpu.matmul %16, %18, %cst_11 {dimension_numbers = #tpu.dot_dimension_numbers<[1], [0], [0], [1], [0, 0, 1, 1], [], []>} : vector<64x8xf32>, vector<8x16xf32>, vector<64x16xf32> -> vector<64x16xf32>
    %c0_12 = arith.constant 0 : index
    %c0_13 = arith.constant 0 : index
    %c0_14 = arith.constant 0 : index
    %20 = vector.load %arg7[%c0_12, %c0_13, %c0_14] : memref<2x8x16xf32, #tpu.memory_space<vmem>>, vector<1x8x16xf32>
    %21 = vector.shape_cast %20 : vector<1x8x16xf32> to vector<8x16xf32>
    %cst_15 = arith.constant dense<0.000000e+00> : vector<64x16xf32>
    %22 = tpu.matmul %16, %21, %cst_15 {dimension_numbers = #tpu.dot_dimension_numbers<[1], [0], [0], [1], [0, 0, 1, 1], [], []>} : vector<64x8xf32>, vector<8x16xf32>, vector<64x16xf32> -> vector<64x16xf32>
    %c0_16 = arith.constant 0 : index
    %c0_17 = arith.constant 0 : index
    %c0_18 = arith.constant 0 : index
    %23 = vector.load %arg13[%c0_16, %c0_17, %c0_18] : memref<2x64x16xf32, #tpu.memory_space<vmem>>, vector<1x64x16xf32>
    %24 = vector.shape_cast %23 : vector<1x64x16xf32> to vector<64x16xf32>
    %cst_19 = arith.constant dense<0.000000e+00> : vector<64x64xf32>
    %25 = tpu.matmul %24, %19, %cst_19 {dimension_numbers = #tpu.dot_dimension_numbers<[1], [1], [0], [0], [0, 0, 1, 0], [], []>} : vector<64x16xf32>, vector<64x16xf32>, vector<64x64xf32> -> vector<64x64xf32>
    %c0_20 = arith.constant 0 : index
    %c0_21 = arith.constant 0 : index
    %c0_22 = arith.constant 0 : index
    %26 = vector.load %arg14[%c0_20, %c0_21, %c0_22] : memref<2x64x1xf32, #tpu.memory_space<vmem>>, vector<1x64x1xf32>
    %27 = vector.shape_cast %26 : vector<1x64x1xf32> to vector<64x1xf32>
    %cst_23 = arith.constant dense<0xFF800000> : vector<64xf32>
    %28 = vector.multi_reduction <maximumf>, %25, %cst_23 [1] : vector<64x64xf32> to vector<64xf32>
    %29 = vector.shape_cast %28 : vector<64xf32> to vector<64x1xf32>
    %30 = arith.maximumf %27, %29 : vector<64x1xf32>
    %31 = arith.subf %27, %30 : vector<64x1xf32>
    %32 = math.exp %31 : vector<64x1xf32>
    %33 = vector.broadcast %30 : vector<64x1xf32> to vector<64x64xf32>
    %34 = arith.subf %25, %33 : vector<64x64xf32>
    %35 = math.exp %34 : vector<64x64xf32>
    %c0_24 = arith.constant 0 : index
    %c0_25 = arith.constant 0 : index
    %c0_26 = arith.constant 0 : index
    %36 = vector.load %arg15[%c0_24, %c0_25, %c0_26] : memref<2x64x1xf32, #tpu.memory_space<vmem>>, vector<1x64x1xf32>
    %37 = vector.shape_cast %36 : vector<1x64x1xf32> to vector<64x1xf32>
    %38 = arith.mulf %32, %37 : vector<64x1xf32>
    %cst_27 = arith.constant dense<0.000000e+00> : vector<64xf32>
    %39 = vector.multi_reduction <add>, %35, %cst_27 [1] : vector<64x64xf32> to vector<64xf32>
    %40 = vector.shape_cast %39 : vector<64xf32> to vector<64x1xf32>
    %41 = arith.addf %38, %40 : vector<64x1xf32>
    %c0_28 = arith.constant 0 : index
    %c0_29 = arith.constant 0 : index
    %c0_30 = arith.constant 0 : index
    %42 = vector.load %arg15[%c0_28, %c0_29, %c0_30] : memref<2x64x1xf32, #tpu.memory_space<vmem>>, vector<1x64x1xf32>
    %43 = vector.shape_cast %42 : vector<1x64x1xf32> to vector<64x1xf32>
    %44 = vector.shape_cast %41 : vector<64x1xf32> to vector<1x64x1xf32>
    tpu.vector_store %arg15[%c0_28, %c0_29, %c0_30], %44 {strides = array<i32>} : memref<2x64x1xf32, #tpu.memory_space<vmem>>, vector<1x64x1xf32>,
    %c0_31 = arith.constant 0 : index
    %c0_32 = arith.constant 0 : index
    %c0_33 = arith.constant 0 : index
    %45 = vector.load %arg16[%c0_31, %c0_32, %c0_33] : memref<2x64x16xf32, #tpu.memory_space<vmem>>, vector<1x64x16xf32>
    %46 = vector.shape_cast %45 : vector<1x64x16xf32> to vector<64x16xf32>
    %47 = vector.broadcast %32 : vector<64x1xf32> to vector<64x16xf32>
    %48 = arith.mulf %47, %46 : vector<64x16xf32>
    %cst_34 = arith.constant dense<0.000000e+00> : vector<64x16xf32>
    %49 = tpu.matmul %35, %22, %cst_34 {dimension_numbers = #tpu.dot_dimension_numbers<[1], [0], [0], [1], [0, 0, 1, 1], [], []>} : vector<64x64xf32>, vector<64x16xf32>, vector<64x16xf32> -> vector<64x16xf32>
    %50 = arith.addf %48, %49 : vector<64x16xf32>
    %c0_35 = arith.constant 0 : index
    %c0_36 = arith.constant 0 : index
    %c0_37 = arith.constant 0 : index
    %51 = vector.load %arg16[%c0_35, %c0_36, %c0_37] : memref<2x64x16xf32, #tpu.memory_space<vmem>>, vector<1x64x16xf32>
    %52 = vector.shape_cast %51 : vector<1x64x16xf32> to vector<64x16xf32>
    %53 = vector.shape_cast %50 : vector<64x16xf32> to vector<1x64x16xf32>
    tpu.vector_store %arg16[%c0_35, %c0_36, %c0_37], %53 {strides = array<i32>} : memref<2x64x16xf32, #tpu.memory_space<vmem>>, vector<1x64x16xf32>,
    %c0_38 = arith.constant 0 : index
    %c0_39 = arith.constant 0 : index
    %c0_40 = arith.constant 0 : index
    %54 = vector.load %arg14[%c0_38, %c0_39, %c0_40] : memref<2x64x1xf32, #tpu.memory_space<vmem>>, vector<1x64x1xf32>
    %55 = vector.shape_cast %54 : vector<1x64x1xf32> to vector<64x1xf32>
    %56 = vector.shape_cast %30 : vector<64x1xf32> to vector<1x64x1xf32>
    tpu.vector_store %arg14[%c0_38, %c0_39, %c0_40], %56 {strides = array<i32>} : memref<2x64x1xf32, #tpu.memory_space<vmem>>, vector<1x64x1xf32>,
    %c1 = arith.constant 1 : index
    %c0_41 = arith.constant 0 : index
    %c0_42 = arith.constant 0 : index
    %57 = vector.load %arg6[%c1, %c0_41, %c0_42] : memref<2x8x16xf32, #tpu.memory_space<vmem>>, vector<1x8x16xf32>
    %58 = vector.shape_cast %57 : vector<1x8x16xf32> to vector<8x16xf32>
    %cst_43 = arith.constant dense<0.000000e+00> : vector<64x16xf32>
    %59 = tpu.matmul %16, %58, %cst_43 {dimension_numbers = #tpu.dot_dimension_numbers<[1], [0], [0], [1], [0, 0, 1, 1], [], []>} : vector<64x8xf32>, vector<8x16xf32>, vector<64x16xf32> -> vector<64x16xf32>
    %c1_44 = arith.constant 1 : index
    %c0_45 = arith.constant 0 : index
    %c0_46 = arith.constant 0 : index
    %60 = vector.load %arg7[%c1_44, %c0_45, %c0_46] : memref<2x8x16xf32, #tpu.memory_space<vmem>>, vector<1x8x16xf32>
    %61 = vector.shape_cast %60 : vector<1x8x16xf32> to vector<8x16xf32>
    %cst_47 = arith.constant dense<0.000000e+00> : vector<64x16xf32>
    %62 = tpu.matmul %16, %61, %cst_47 {dimension_numbers = #tpu.dot_dimension_numbers<[1], [0], [0], [1], [0, 0, 1, 1], [], []>} : vector<64x8xf32>, vector<8x16xf32>, vector<64x16xf32> -> vector<64x16xf32>
    %c1_48 = arith.constant 1 : index
    %c0_49 = arith.constant 0 : index
    %c0_50 = arith.constant 0 : index
    %63 = vector.load %arg13[%c1_48, %c0_49, %c0_50] : memref<2x64x16xf32, #tpu.memory_space<vmem>>, vector<1x64x16xf32>
    %64 = vector.shape_cast %63 : vector<1x64x16xf32> to vector<64x16xf32>
    %cst_51 = arith.constant dense<0.000000e+00> : vector<64x64xf32>
    %65 = tpu.matmul %64, %59, %cst_51 {dimension_numbers = #tpu.dot_dimension_numbers<[1], [1], [0], [0], [0, 0, 1, 0], [], []>} : vector<64x16xf32>, vector<64x16xf32>, vector<64x64xf32> -> vector<64x64xf32>
    %c1_52 = arith.constant 1 : index
    %c0_53 = arith.constant 0 : index
    %c0_54 = arith.constant 0 : index
    %66 = vector.load %arg14[%c1_52, %c0_53, %c0_54] : memref<2x64x1xf32, #tpu.memory_space<vmem>>, vector<1x64x1xf32>
    %67 = vector.shape_cast %66 : vector<1x64x1xf32> to vector<64x1xf32>
    %cst_55 = arith.constant dense<0xFF800000> : vector<64xf32>
    %68 = vector.multi_reduction <maximumf>, %65, %cst_55 [1] : vector<64x64xf32> to vector<64xf32>
    %69 = vector.shape_cast %68 : vector<64xf32> to vector<64x1xf32>
    %70 = arith.maximumf %67, %69 : vector<64x1xf32>
    %71 = arith.subf %67, %70 : vector<64x1xf32>
    %72 = math.exp %71 : vector<64x1xf32>
    %73 = vector.broadcast %70 : vector<64x1xf32> to vector<64x64xf32>
    %74 = arith.subf %65, %73 : vector<64x64xf32>
    %75 = math.exp %74 : vector<64x64xf32>
    %c1_56 = arith.constant 1 : index
    %c0_57 = arith.constant 0 : index
    %c0_58 = arith.constant 0 : index
    %76 = vector.load %arg15[%c1_56, %c0_57, %c0_58] : memref<2x64x1xf32, #tpu.memory_space<vmem>>, vector<1x64x1xf32>
    %77 = vector.shape_cast %76 : vector<1x64x1xf32> to vector<64x1xf32>
    %78 = arith.mulf %72, %77 : vector<64x1xf32>
    %cst_59 = arith.constant dense<0.000000e+00> : vector<64xf32>
    %79 = vector.multi_reduction <add>, %75, %cst_59 [1] : vector<64x64xf32> to vector<64xf32>
    %80 = vector.shape_cast %79 : vector<64xf32> to vector<64x1xf32>
    %81 = arith.addf %78, %80 : vector<64x1xf32>
    %c1_60 = arith.constant 1 : index
    %c0_61 = arith.constant 0 : index
    %c0_62 = arith.constant 0 : index
    %82 = vector.load %arg15[%c1_60, %c0_61, %c0_62] : memref<2x64x1xf32, #tpu.memory_space<vmem>>, vector<1x64x1xf32>
    %83 = vector.shape_cast %82 : vector<1x64x1xf32> to vector<64x1xf32>
    %84 = vector.shape_cast %81 : vector<64x1xf32> to vector<1x64x1xf32>
    tpu.vector_store %arg15[%c1_60, %c0_61, %c0_62], %84 {strides = array<i32>} : memref<2x64x1xf32, #tpu.memory_space<vmem>>, vector<1x64x1xf32>,
    %c1_63 = arith.constant 1 : index
    %c0_64 = arith.constant 0 : index
    %c0_65 = arith.constant 0 : index
    %85 = vector.load %arg16[%c1_63, %c0_64, %c0_65] : memref<2x64x16xf32, #tpu.memory_space<vmem>>, vector<1x64x16xf32>
    %86 = vector.shape_cast %85 : vector<1x64x16xf32> to vector<64x16xf32>
    %87 = vector.broadcast %72 : vector<64x1xf32> to vector<64x16xf32>
    %88 = arith.mulf %87, %86 : vector<64x16xf32>
    %cst_66 = arith.constant dense<0.000000e+00> : vector<64x16xf32>
    %89 = tpu.matmul %75, %62, %cst_66 {dimension_numbers = #tpu.dot_dimension_numbers<[1], [0], [0], [1], [0, 0, 1, 1], [], []>} : vector<64x64xf32>, vector<64x16xf32>, vector<64x16xf32> -> vector<64x16xf32>
    %90 = arith.addf %88, %89 : vector<64x16xf32>
    %c1_67 = arith.constant 1 : index
    %c0_68 = arith.constant 0 : index
    %c0_69 = arith.constant 0 : index
    %91 = vector.load %arg16[%c1_67, %c0_68, %c0_69] : memref<2x64x16xf32, #tpu.memory_space<vmem>>, vector<1x64x16xf32>
    %92 = vector.shape_cast %91 : vector<1x64x16xf32> to vector<64x16xf32>
    %93 = vector.shape_cast %90 : vector<64x16xf32> to vector<1x64x16xf32>
    tpu.vector_store %arg16[%c1_67, %c0_68, %c0_69], %93 {strides = array<i32>} : memref<2x64x16xf32, #tpu.memory_space<vmem>>, vector<1x64x16xf32>,
    %c1_70 = arith.constant 1 : index
    %c0_71 = arith.constant 0 : index
    %c0_72 = arith.constant 0 : index
    %94 = vector.load %arg14[%c1_70, %c0_71, %c0_72] : memref<2x64x1xf32, #tpu.memory_space<vmem>>, vector<1x64x1xf32>
    %95 = vector.shape_cast %94 : vector<1x64x1xf32> to vector<64x1xf32>
    %96 = vector.shape_cast %70 : vector<64x1xf32> to vector<1x64x1xf32>
    tpu.vector_store %arg14[%c1_70, %c0_71, %c0_72], %96 {strides = array<i32>} : memref<2x64x1xf32, #tpu.memory_space<vmem>>, vector<1x64x1xf32>,
    %c3_i32 = arith.constant 3 : i32
    %97 = arith.cmpi eq, %arg2, %c3_i32 : i32
    %98 = arith.extui %97 : i1 to i32
    %c0_i32_73 = arith.constant 0 : i32
    %99 = arith.cmpi ne, %98, %c0_i32_73 : i32
    scf.if %99 {
      %c0_74 = arith.constant 0 : index
      %c0_75 = arith.constant 0 : index
      %100 = vector.load %arg10[%c0_74, %c0_75] : memref<1x8xf32, #tpu.memory_space<vmem>>, vector<1x8xf32>
      %101 = vector.shape_cast %100 : vector<1x8xf32> to vector<1x8xf32>
      %102 = vector.broadcast %101 : vector<1x8xf32> to vector<64x8xf32>
      %c0_76 = arith.constant 0 : index
      %c0_77 = arith.constant 0 : index
      %c0_78 = arith.constant 0 : index
      %103 = vector.load %arg15[%c0_76, %c0_77, %c0_78] : memref<2x64x1xf32, #tpu.memory_space<vmem>>, vector<1x64x1xf32>
      %104 = vector.shape_cast %103 : vector<1x64x1xf32> to vector<64x1xf32>
      %105 = tpu.reciprocal %104 : vector<64x1xf32> -> vector<64x1xf32>
      %c0_79 = arith.constant 0 : index
      %c0_80 = arith.constant 0 : index
      %c0_81 = arith.constant 0 : index
      %106 = vector.load %arg16[%c0_79, %c0_80, %c0_81] : memref<2x64x16xf32, #tpu.memory_space<vmem>>, vector<1x64x16xf32>
      %107 = vector.shape_cast %106 : vector<1x64x16xf32> to vector<64x16xf32>
      %108 = vector.broadcast %105 : vector<64x1xf32> to vector<64x16xf32>
      %109 = arith.mulf %107, %108 : vector<64x16xf32>
      %c0_82 = arith.constant 0 : index
      %c0_83 = arith.constant 0 : index
      %c0_84 = arith.constant 0 : index
      %110 = vector.load %arg8[%c0_82, %c0_83, %c0_84] : memref<2x16x8xf32, #tpu.memory_space<vmem>>, vector<1x16x8xf32>
      %111 = vector.shape_cast %110 : vector<1x16x8xf32> to vector<16x8xf32>
      %cst_85 = arith.constant dense<0.000000e+00> : vector<64x8xf32>
      %112 = tpu.matmul %109, %111, %cst_85 {dimension_numbers = #tpu.dot_dimension_numbers<[1], [0], [0], [1], [0, 0, 1, 1], [], []>} : vector<64x16xf32>, vector<16x8xf32>, vector<64x8xf32> -> vector<64x8xf32>
      %113 = arith.addf %102, %112 : vector<64x8xf32>
      %c1_86 = arith.constant 1 : index
      %c0_87 = arith.constant 0 : index
      %c0_88 = arith.constant 0 : index
      %114 = vector.load %arg15[%c1_86, %c0_87, %c0_88] : memref<2x64x1xf32, #tpu.memory_space<vmem>>, vector<1x64x1xf32>
      %115 = vector.shape_cast %114 : vector<1x64x1xf32> to vector<64x1xf32>
      %116 = tpu.reciprocal %115 : vector<64x1xf32> -> vector<64x1xf32>
      %c1_89 = arith.constant 1 : index
      %c0_90 = arith.constant 0 : index
      %c0_91 = arith.constant 0 : index
      %117 = vector.load %arg16[%c1_89, %c0_90, %c0_91] : memref<2x64x16xf32, #tpu.memory_space<vmem>>, vector<1x64x16xf32>
      %118 = vector.shape_cast %117 : vector<1x64x16xf32> to vector<64x16xf32>
      %119 = vector.broadcast %116 : vector<64x1xf32> to vector<64x16xf32>
      %120 = arith.mulf %118, %119 : vector<64x16xf32>
      %c1_92 = arith.constant 1 : index
      %c0_93 = arith.constant 0 : index
      %c0_94 = arith.constant 0 : index
      %121 = vector.load %arg8[%c1_92, %c0_93, %c0_94] : memref<2x16x8xf32, #tpu.memory_space<vmem>>, vector<1x16x8xf32>
      %122 = vector.shape_cast %121 : vector<1x16x8xf32> to vector<16x8xf32>
      %cst_95 = arith.constant dense<0.000000e+00> : vector<64x8xf32>
      %123 = tpu.matmul %120, %122, %cst_95 {dimension_numbers = #tpu.dot_dimension_numbers<[1], [0], [0], [1], [0, 0, 1, 1], [], []>} : vector<64x16xf32>, vector<16x8xf32>, vector<64x8xf32> -> vector<64x8xf32>
      %124 = arith.addf %113, %123 : vector<64x8xf32>
      %125 = arith.mulf %124, %124 : vector<64x8xf32>
      %cst_96 = arith.constant dense<0.000000e+00> : vector<64xf32>
      %126 = vector.multi_reduction <add>, %125, %cst_96 [1] : vector<64x8xf32> to vector<64xf32>
      %127 = vector.shape_cast %126 : vector<64xf32> to vector<64x1xf32>
      %cst_97 = arith.constant 1.000000e-24 : f32
      %128 = vector.broadcast %cst_97 : f32 to vector<64x1xf32>
      %129 = arith.maximumf %127, %128 : vector<64x1xf32>
      %130 = math.rsqrt %129 : vector<64x1xf32>
      %131 = vector.broadcast %130 : vector<64x1xf32> to vector<64x8xf32>
      %132 = arith.mulf %124, %131 : vector<64x8xf32>
      %133 = vector.broadcast %1 : vector<1x8xf32> to vector<64x8xf32>
      %134 = arith.mulf %132, %133 : vector<64x8xf32>
      %c0_98 = arith.constant 0 : index
      %c0_99 = arith.constant 0 : index
      %c0_100 = arith.constant 0 : index
      %135 = vector.load %arg12[%c0_98, %c0_99, %c0_100] : memref<1x64x8xf32, #tpu.memory_space<vmem>>, vector<1x64x8xf32>
      %136 = vector.shape_cast %135 : vector<1x64x8xf32> to vector<64x8xf32>
      %137 = vector.shape_cast %134 : vector<64x8xf32> to vector<1x64x8xf32>
      tpu.vector_store %arg12[%c0_98, %c0_99, %c0_100], %137 {strides = array<i32>} : memref<1x64x8xf32, #tpu.memory_space<vmem>>, vector<1x64x8xf32>,
    } else {
    }
    return
  }
  func.func @transform_0(%arg0: i32, %arg1: i32, %arg2: i32) -> (i32, i32, i32) {
    %c0_i32 = arith.constant 0 : i32
    %c0_i32_0 = arith.constant 0 : i32
    return %arg0, %arg1, %c0_i32 : i32, i32, i32
  }
  func.func @transform_1(%arg0: i32, %arg1: i32, %arg2: i32) -> (i32, i32, i32) {
    %c0_i32 = arith.constant 0 : i32
    %c0_i32_0 = arith.constant 0 : i32
    return %arg0, %arg2, %c0_i32 : i32, i32, i32
  }
  func.func @transform_2(%arg0: i32, %arg1: i32, %arg2: i32) -> (i32, i32, i32) {
    %c0_i32 = arith.constant 0 : i32
    %c0_i32_0 = arith.constant 0 : i32
    %c0_i32_1 = arith.constant 0 : i32
    %c0_i32_2 = arith.constant 0 : i32
    return %c0_i32, %c0_i32_0, %c0_i32_1 : i32, i32, i32
  }
  func.func @transform_3(%arg0: i32, %arg1: i32, %arg2: i32) -> (i32, i32, i32) {
    %c0_i32 = arith.constant 0 : i32
    %c0_i32_0 = arith.constant 0 : i32
    %c0_i32_1 = arith.constant 0 : i32
    %c0_i32_2 = arith.constant 0 : i32
    return %c0_i32, %c0_i32_0, %c0_i32_1 : i32, i32, i32
  }
  func.func @transform_4(%arg0: i32, %arg1: i32, %arg2: i32) -> (i32, i32, i32) {
    %c0_i32 = arith.constant 0 : i32
    %c0_i32_0 = arith.constant 0 : i32
    %c0_i32_1 = arith.constant 0 : i32
    %c0_i32_2 = arith.constant 0 : i32
    return %c0_i32, %c0_i32_0, %c0_i32_1 : i32, i32, i32
  }
  func.func @transform_5(%arg0: i32, %arg1: i32, %arg2: i32) -> (i32, i32, i32) {
    %c0_i32 = arith.constant 0 : i32
    %c0_i32_0 = arith.constant 0 : i32
    %c0_i32_1 = arith.constant 0 : i32
    %c0_i32_2 = arith.constant 0 : i32
    return %c0_i32, %c0_i32_0, %c0_i32_1 : i32, i32, i32
  }
  func.func @transform_6(%arg0: i32, %arg1: i32, %arg2: i32) -> (i32, i32) {
    %c0_i32 = arith.constant 0 : i32
    %c0_i32_0 = arith.constant 0 : i32
    %c0_i32_1 = arith.constant 0 : i32
    return %c0_i32, %c0_i32_0 : i32, i32
  }
  func.func @transform_7(%arg0: i32, %arg1: i32, %arg2: i32) -> (i32, i32) {
    %c0_i32 = arith.constant 0 : i32
    %c0_i32_0 = arith.constant 0 : i32
    %c0_i32_1 = arith.constant 0 : i32
    return %c0_i32, %c0_i32_0 : i32, i32
  }
  func.func @transform_8(%arg0: i32, %arg1: i32, %arg2: i32) -> (i32, i32) {
    %c0_i32 = arith.constant 0 : i32
    %c0_i32_0 = arith.constant 0 : i32
    %c0_i32_1 = arith.constant 0 : i32
    return %c0_i32, %c0_i32_0 : i32, i32
  }
  func.func @transform_9(%arg0: i32, %arg1: i32, %arg2: i32) -> (i32, i32, i32) {
    %c0_i32 = arith.constant 0 : i32
    %c0_i32_0 = arith.constant 0 : i32
    return %arg0, %arg1, %c0_i32 : i32, i32, i32
  }
}

</mosaic_0001>

<llo_original>
// kernel: tpu_custom_call.1
$region0: #{tpu_custom_call.1}
  #allocation0 [shape = 'u32[]', space=smem, size = 0x4, offset = 0x4, fixed_abs, tag = 'smem constant byte address 0x4 - core index']
  #allocation1 [shape = 'u32[72,128]{1,0:T(1,128)}', space=vmem, size = 0x9000, scoped, tag = 'internal scratch']
  #allocation2 [shape = 'f32[2,64,16]{2,1,0:T(8,128)}', space=vmem, size = 0x10000, scoped, tag = 'scratch operand']
  #allocation3 [shape = 'f32[2,64,1]{2,1,0:T(8,128)}', space=vmem, size = 0x10000, scoped, tag = 'scratch operand']
  #allocation4 [shape = 'f32[2,64,1]{2,1,0:T(8,128)}', space=vmem, size = 0x10000, scoped, tag = 'scratch operand']
  #allocation5 [shape = 'f32[2,64,16]{2,1,0:T(8,128)}', space=vmem, size = 0x10000, scoped, tag = 'scratch operand']
  %s0 = inlined_call_operand.vmem [shape: f32[2,256,8], index: 0, kind: input, shape index: {}]
  %s1 = inlined_call_operand.vmem [shape: f32[2,256,8], index: 1, kind: input, shape index: {}]
  %s2 = inlined_call_operand.vmem [shape: f32[2,8,16], index: 2, kind: input, shape index: {}]
  %s3 = inlined_call_operand.vmem [shape: f32[2,8,16], index: 3, kind: input, shape index: {}]
  %s4 = inlined_call_operand.vmem [shape: f32[2,8,16], index: 4, kind: input, shape index: {}]
  %s5 = inlined_call_operand.vmem [shape: f32[2,16,8], index: 5, kind: input, shape index: {}]
  %s6 = inlined_call_operand.vmem [shape: f32[1,8], index: 6, kind: input, shape index: {}]
  %s7 = inlined_call_operand.vmem [shape: f32[1,8], index: 7, kind: input, shape index: {}]
  %s8 = inlined_call_operand.vmem [shape: f32[1,8], index: 8, kind: input, shape index: {}]
  %s9 = inlined_call_operand.vmem [shape: f32[2,256,8], index: 9, kind: output, shape index: {}]
  %s10 = sld [smem:[#allocation0]]
  $region77: #{tpu_custom_call.1} parent=0
    _
  %s12 = ssub.s32 1, %s10
  %s13 = scalar_select 0, %s12, %s10
  loop: start=0, step=1, limit=34
  $region2: #{tpu_custom_call.1} parent=0 // loop_pre_header
    _
  $region3: #{tpu_custom_call.1} parent=0 // loop_header
    %s15 = sphi 0, %s19
    %p16 = scmp.ge.s32.totalorder %s15, 34
    %s22 = sphi 0, %s41
    %s23 = sphi 0, %s37
    %s24 = sphi 0, %s33
    %s25 = sphi 0, %s22
    %s26 = sphi 0, %s23
    %s27 = sphi 0, %s24
    %s28 = sphi 0, %s25
    %s29 = sphi 0, %s26
    %s30 = sphi 0, %s27
    %s46 = sphi 0, %s48
    %s49 = sphi 0, %s46
    %s50 = sphi 0, %s49
    %s66 = sphi 0, %s50
    %s74 = sphi 0, %s76
    %s77 = sphi 0, %s74
    %s78 = sphi 0, %s77
    %s94 = sphi 0, %s78
    %s98 = sphi 0, %s98
    %s100 = sphi 0, %s98
    %s101 = sphi 0, %s100
    %s115 = sphi 0, %s101
    %s119 = sphi 0, %s119
    %s121 = sphi 0, %s119
    %s122 = sphi 0, %s121
    %s136 = sphi 0, %s122
    %s140 = sphi 0, %s140
    %s142 = sphi 0, %s140
    %s143 = sphi 0, %s142
    %s157 = sphi 0, %s143
    %s161 = sphi 0, %s161
    %s163 = sphi 0, %s161
    %s164 = sphi 0, %s163
    %s178 = sphi 0, %s164
    %s182 = sphi 0, %s182
    %s184 = sphi 0, %s182
    %s185 = sphi 0, %s184
    %s199 = sphi 0, %s185
    %s203 = sphi 0, %s203
    %s205 = sphi 0, %s203
    %s206 = sphi 0, %s205
    %s220 = sphi 0, %s206
    %s224 = sphi 0, %s224
    %s226 = sphi 0, %s224
    %s227 = sphi 0, %s226
    %s241 = sphi 0, %s227
    %s249 = sphi 0, %s251
    %s252 = sphi 0, %s249
    %s253 = sphi 0, %s252
    %s269 = sphi 0, %s253
  $region4: #{tpu_custom_call.1} parent=0 // loop_header_branch
    %18 = sbr.rel (%p16) target = $region8
  $region5: #{tpu_custom_call.1} parent=0 // loop_body
    %s20 = ssub.s32 %s15, 1
    %s21 = ssub.s32 %s15, 2
    %s31 = sadd.s32 1, %s24
    %p32 = scmp.ge.s32.totalorder %s31, 4
    %s33 = scalar_select %p32, 0, %s31
    %s34 = sadd.s32 1, %s23
    %s35 = scalar_select %p32, %s34, %s23
    %p36 = scmp.ge.s32.totalorder %s35, 4
    %s37 = scalar_select %p36, 0, %s35
    %s38 = sadd.s32 1, %s22
    %s39 = scalar_select %p36, %s38, %s22
    %p40 = scmp.ge.s32.totalorder %s39, 2
    %s41 = scalar_select %p40, 0, %s39
    %s42 = ssub.s32 %s22, %s41
    %s43 = ssub.s32 %s23, %s37
    %s44 = sor.u32 %s42, %s43
    %p45 = scmp.eq.s32.totalorder %s44, 0
    %s47 = sadd.s32 %s46, 1
    %s48 = scalar_select %p45, %s46, %s47
    %p51 = pneg %p45
    %p52 = scmp.eq.s32.totalorder %s15, 31
    %p53 = por %p51, %p52
    %p54 = scmp.ne.s32.totalorder %s46, %s49
    %p55 = scmp.eq.s32.totalorder %s15, 0
    %p56 = por %p54, %p55
    %p57 = scmp.ne.s32.totalorder %s46, %s49
    %p58 = scmp.eq.s32.totalorder %s20, 31
    %p59 = por %p57, %p58
    %p60 = scmp.ne.s32.totalorder %s49, %s50
    %p61 = scmp.eq.s32.totalorder %s20, 0
    %p62 = por %p60, %p61
    %p63 = scmp.ne.s32.totalorder %s49, %s50
    %p64 = scmp.eq.s32.totalorder %s21, 31
    %p65 = por %p63, %p64
    %p67 = scmp.ne.s32.totalorder %s50, %s66
    %p68 = scmp.eq.s32.totalorder %s21, 0
    %p69 = por %p67, %p68
    %s70 = ssub.s32 %s22, %s41
    %s71 = ssub.s32 %s24, %s33
    %s72 = sor.u32 %s70, %s71
    %p73 = scmp.eq.s32.totalorder %s72, 0
    %s75 = sadd.s32 %s74, 1
    %s76 = scalar_select %p73, %s74, %s75
    %p79 = pneg %p73
    %p80 = scmp.eq.s32.totalorder %s15, 31
    %p81 = por %p79, %p80
    %p82 = scmp.ne.s32.totalorder %s74, %s77
    %p83 = scmp.eq.s32.totalorder %s15, 0
    %p84 = por %p82, %p83
    %p85 = scmp.ne.s32.totalorder %s74, %s77
    %p86 = scmp.eq.s32.totalorder %s20, 31
    %p87 = por %p85, %p86
    %p88 = scmp.ne.s32.totalorder %s77, %s78
    %p89 = scmp.eq.s32.totalorder %s20, 0
    %p90 = por %p88, %p89
    %p91 = scmp.ne.s32.totalorder %s77, %s78
    %p92 = scmp.eq.s32.totalorder %s21, 31
    %p93 = por %p91, %p92
    %p95 = scmp.ne.s32.totalorder %s78, %s94
    %p96 = scmp.eq.s32.totalorder %s21, 0
    %p97 = por %p95, %p96
    %s99 = sadd.s32 %s98, 1
    %p102 = scmp.eq.s32.totalorder %s15, 31
    %p103 = scmp.ne.s32.totalorder %s98, %s100
    %p104 = scmp.eq.s32.totalorder %s15, 0
    %p105 = por %p103, %p104
    %p106 = scmp.ne.s32.totalorder %s98, %s100
    %p107 = scmp.eq.s32.totalorder %s20, 31
    %p108 = por %p106, %p107
    %p109 = scmp.ne.s32.totalorder %s100, %s101
    %p110 = scmp.eq.s32.totalorder %s20, 0
    %p111 = por %p109, %p110
    %p112 = scmp.ne.s32.totalorder %s100, %s101
    %p113 = scmp.eq.s32.totalorder %s21, 31
    %p114 = por %p112, %p113
    %p116 = scmp.ne.s32.totalorder %s101, %s115
    %p117 = scmp.eq.s32.totalorder %s21, 0
    %p118 = por %p116, %p117
    %s120 = sadd.s32 %s119, 1
    %p123 = scmp.eq.s32.totalorder %s15, 31
    %p124 = scmp.ne.s32.totalorder %s119, %s121
    %p125 = scmp.eq.s32.totalorder %s15, 0
    %p126 = por %p124, %p125
    %p127 = scmp.ne.s32.totalorder %s119, %s121
    %p128 = scmp.eq.s32.totalorder %s20, 31
    %p129 = por %p127, %p128
    %p130 = scmp.ne.s32.totalorder %s121, %s122
    %p131 = scmp.eq.s32.totalorder %s20, 0
    %p132 = por %p130, %p131
    %p133 = scmp.ne.s32.totalorder %s121, %s122
    %p134 = scmp.eq.s32.totalorder %s21, 31
    %p135 = por %p133, %p134
    %p137 = scmp.ne.s32.totalorder %s122, %s136
    %p138 = scmp.eq.s32.totalorder %s21, 0
    %p139 = por %p137, %p138
    %s141 = sadd.s32 %s140, 1
    %p144 = scmp.eq.s32.totalorder %s15, 31
    %p145 = scmp.ne.s32.totalorder %s140, %s142
    %p146 = scmp.eq.s32.totalorder %s15, 0
    %p147 = por %p145, %p146
    %p148 = scmp.ne.s32.totalorder %s140, %s142
    %p149 = scmp.eq.s32.totalorder %s20, 31
    %p150 = por %p148, %p149
    %p151 = scmp.ne.s32.totalorder %s142, %s143
    %p152 = scmp.eq.s32.totalorder %s20, 0
    %p153 = por %p151, %p152
    %p154 = scmp.ne.s32.totalorder %s142, %s143
    %p155 = scmp.eq.s32.totalorder %s21, 31
    %p156 = por %p154, %p155
    %p158 = scmp.ne.s32.totalorder %s143, %s157
    %p159 = scmp.eq.s32.totalorder %s21, 0
    %p160 = por %p158, %p159
    %s162 = sadd.s32 %s161, 1
    %p165 = scmp.eq.s32.totalorder %s15, 31
    %p166 = scmp.ne.s32.totalorder %s161, %s163
    %p167 = scmp.eq.s32.totalorder %s15, 0
    %p168 = por %p166, %p167
    %p169 = scmp.ne.s32.totalorder %s161, %s163
    %p170 = scmp.eq.s32.totalorder %s20, 31
    %p171 = por %p169, %p170
    %p172 = scmp.ne.s32.totalorder %s163, %s164
    %p173 = scmp.eq.s32.totalorder %s20, 0
    %p174 = por %p172, %p173
    %p175 = scmp.ne.s32.totalorder %s163, %s164
    %p176 = scmp.eq.s32.totalorder %s21, 31
    %p177 = por %p175, %p176
    %p179 = scmp.ne.s32.totalorder %s164, %s178
    %p180 = scmp.eq.s32.totalorder %s21, 0
    %p181 = por %p179, %p180
    %s183 = sadd.s32 %s182, 1
    %p186 = scmp.eq.s32.totalorder %s15, 31
    %p187 = scmp.ne.s32.totalorder %s182, %s184
    %p188 = scmp.eq.s32.totalorder %s15, 0
    %p189 = por %p187, %p188
    %p190 = scmp.ne.s32.totalorder %s182, %s184
    %p191 = scmp.eq.s32.totalorder %s20, 31
    %p192 = por %p190, %p191
    %p193 = scmp.ne.s32.totalorder %s184, %s185
    %p194 = scmp.eq.s32.totalorder %s20, 0
    %p195 = por %p193, %p194
    %p196 = scmp.ne.s32.totalorder %s184, %s185
    %p197 = scmp.eq.s32.totalorder %s21, 31
    %p198 = por %p196, %p197
    %p200 = scmp.ne.s32.totalorder %s185, %s199
    %p201 = scmp.eq.s32.totalorder %s21, 0
    %p202 = por %p200, %p201
    %s204 = sadd.s32 %s203, 1
    %p207 = scmp.eq.s32.totalorder %s15, 31
    %p208 = scmp.ne.s32.totalorder %s203, %s205
    %p209 = scmp.eq.s32.totalorder %s15, 0
    %p210 = por %p208, %p209
    %p211 = scmp.ne.s32.totalorder %s203, %s205
    %p212 = scmp.eq.s32.totalorder %s20, 31
    %p213 = por %p211, %p212
    %p214 = scmp.ne.s32.totalorder %s205, %s206
    %p215 = scmp.eq.s32.totalorder %s20, 0
    %p216 = por %p214, %p215
    %p217 = scmp.ne.s32.totalorder %s205, %s206
    %p218 = scmp.eq.s32.totalorder %s21, 31
    %p219 = por %p217, %p218
    %p221 = scmp.ne.s32.totalorder %s206, %s220
    %p222 = scmp.eq.s32.totalorder %s21, 0
    %p223 = por %p221, %p222
    %s225 = sadd.s32 %s224, 1
    %p228 = scmp.eq.s32.totalorder %s15, 31
    %p229 = scmp.ne.s32.totalorder %s224, %s226
    %p230 = scmp.eq.s32.totalorder %s15, 0
    %p231 = por %p229, %p230
    %p232 = scmp.ne.s32.totalorder %s224, %s226
    %p233 = scmp.eq.s32.totalorder %s20, 31
    %p234 = por %p232, %p233
    %p235 = scmp.ne.s32.totalorder %s226, %s227
    %p236 = scmp.eq.s32.totalorder %s20, 0
    %p237 = por %p235, %p236
    %p238 = scmp.ne.s32.totalorder %s226, %s227
    %p239 = scmp.eq.s32.totalorder %s21, 31
    %p240 = por %p238, %p239
    %p242 = scmp.ne.s32.totalorder %s227, %s241
    %p243 = scmp.eq.s32.totalorder %s21, 0
    %p244 = por %p242, %p243
    %s245 = ssub.s32 %s22, %s41
    %s246 = ssub.s32 %s23, %s37
    %s247 = sor.u32 %s245, %s246
    %p248 = scmp.eq.s32.totalorder %s247, 0
    %s250 = sadd.s32 %s249, 1
    %s251 = scalar_select %p248, %s249, %s250
    %p254 = pneg %p248
    %p255 = scmp.eq.s32.totalorder %s15, 31
    %p256 = por %p254, %p255
    %p257 = scmp.ne.s32.totalorder %s249, %s252
    %p258 = scmp.eq.s32.totalorder %s15, 0
    %p259 = por %p257, %p258
    %p260 = scmp.ne.s32.totalorder %s249, %s252
    %p261 = scmp.eq.s32.totalorder %s20, 31
    %p262 = por %p260, %p261
    %p263 = scmp.ne.s32.totalorder %s252, %s253
    %p264 = scmp.eq.s32.totalorder %s20, 0
    %p265 = por %p263, %p264
    %p266 = scmp.ne.s32.totalorder %s252, %s253
    %p267 = scmp.eq.s32.totalorder %s21, 31
    %p268 = por %p266, %p267
    %p270 = scmp.ne.s32.totalorder %s253, %s269
    %p271 = scmp.eq.s32.totalorder %s21, 0
    %p272 = por %p270, %p271
    %p273 = scmp.le.s32.totalorder 1, %s15
    %p274 = scmp.lt.s32.totalorder %s15, 33
    %p275 = pnand %p273, %p274
    %p276 = pneg %p275
    // Predicated region
    $region9: #{tpu_custom_call.1} parent=5 // pred_check
      _
    $region10: #{tpu_custom_call.1} parent=5 // pred_check_branch
      %278 = sbr.rel (%p275) target = $region12
    $region11: #{tpu_custom_call.1} parent=5 // pred_region
      %s279 = ssub.s32 %s15, 1
      // Predicated region
      $region13: #{tpu_custom_call.1} parent=11 // pred_check
        %p280 = pneg %p111
      $region14: #{tpu_custom_call.1} parent=11 // pred_check_branch
        %282 = sbr.rel (%p280) target = $region16
      $region15: #{tpu_custom_call.1} parent=11 // pred_region
        _
      $region16: #{tpu_custom_call.1} parent=11 // pred_fallthru
        _
      // Predicated region
      $region17: #{tpu_custom_call.1} parent=11 // pred_check
        %p283 = pneg %p132
      $region18: #{tpu_custom_call.1} parent=11 // pred_check_branch
        %285 = sbr.rel (%p283) target = $region20
      $region19: #{tpu_custom_call.1} parent=11 // pred_region
        _
      $region20: #{tpu_custom_call.1} parent=11 // pred_fallthru
        _
      // Predicated region
      $region21: #{tpu_custom_call.1} parent=11 // pred_check
        %p286 = pneg %p153
      $region22: #{tpu_custom_call.1} parent=11 // pred_check_branch
        %288 = sbr.rel (%p286) target = $region24
      $region23: #{tpu_custom_call.1} parent=11 // pred_region
        _
      $region24: #{tpu_custom_call.1} parent=11 // pred_fallthru
        _
      // Predicated region
      $region25: #{tpu_custom_call.1} parent=11 // pred_check
        %p289 = pneg %p174
      $region26: #{tpu_custom_call.1} parent=11 // pred_check_branch
        %291 = sbr.rel (%p289) target = $region28
      $region27: #{tpu_custom_call.1} parent=11 // pred_region
        _
      $region28: #{tpu_custom_call.1} parent=11 // pred_fallthru
        _
      // Predicated region
      $region29: #{tpu_custom_call.1} parent=11 // pred_check
        %p292 = pneg %p195
      $region30: #{tpu_custom_call.1} parent=11 // pred_check_branch
        %294 = sbr.rel (%p292) target = $region32
      $region31: #{tpu_custom_call.1} parent=11 // pred_region
        _
      $region32: #{tpu_custom_call.1} parent=11 // pred_fallthru
        _
      // Predicated region
      $region33: #{tpu_custom_call.1} parent=11 // pred_check
        %p295 = pneg %p216
      $region34: #{tpu_custom_call.1} parent=11 // pred_check_branch
        %297 = sbr.rel (%p295) target = $region36
      $region35: #{tpu_custom_call.1} parent=11 // pred_region
        _
      $region36: #{tpu_custom_call.1} parent=11 // pred_fallthru
        _
      // Predicated region
      $region37: #{tpu_custom_call.1} parent=11 // pred_check
        %p298 = pneg %p237
      $region38: #{tpu_custom_call.1} parent=11 // pred_check_branch
        %300 = sbr.rel (%p298) target = $region40
      $region39: #{tpu_custom_call.1} parent=11 // pred_region
        _
      $region40: #{tpu_custom_call.1} parent=11 // pred_fallthru
        _
    $region12: #{tpu_custom_call.1} parent=5 // pred_fallthru
      _
    %p301 = scmp.lt.s32.totalorder %s15, 32
    // Predicated region
    $region41: #{tpu_custom_call.1} parent=5 // pred_check
      %p302 = pneg %p301
    $region42: #{tpu_custom_call.1} parent=5 // pred_check_branch
      %304 = sbr.rel (%p302) target = $region44
    $region43: #{tpu_custom_call.1} parent=5 // pred_region
      // Predicated region
      $region45: #{tpu_custom_call.1} parent=43 // pred_check
        %p305 = pneg %p56
      $region46: #{tpu_custom_call.1} parent=43 // pred_check_branch
        %307 = sbr.rel (%p305) target = $region48
      $region47: #{tpu_custom_call.1} parent=43 // pred_region
        %s308 = smul.u32 8, %s23
        %p309 = scmp.lt.s32.totalorder %s22, 1
        %s310 = scalar_select %p309, %s22, 1
        %p311 = scmp.lt.s32.totalorder %s308, 31
        %s312 = scalar_select %p311, %s308, 31
        %s313 = smul.addr %s310, 32
        %s314 = sadd.s32 %s312, %s313
        %s315 = smul.addr %s314, 8
        %s316 = scalar_lea.vmem %s0, %s315
        %s317 = smul.u32 8, %s23
      $region48: #{tpu_custom_call.1} parent=43 // pred_fallthru
        _
      // Predicated region
      $region49: #{tpu_custom_call.1} parent=43 // pred_check
        %p318 = pneg %p84
      $region50: #{tpu_custom_call.1} parent=43 // pred_check_branch
        %320 = sbr.rel (%p318) target = $region52
      $region51: #{tpu_custom_call.1} parent=43 // pred_region
        %s321 = smul.u32 8, %s24
        %p322 = scmp.lt.s32.totalorder %s22, 1
        %s323 = scalar_select %p322, %s22, 1
        %p324 = scmp.lt.s32.totalorder %s321, 31
        %s325 = scalar_select %p324, %s321, 31
        %s326 = smul.addr %s323, 32
        %s327 = sadd.s32 %s325, %s326
        %s328 = smul.addr %s327, 8
        %s329 = scalar_lea.vmem %s1, %s328
        %s330 = smul.u32 8, %s24
      $region52: #{tpu_custom_call.1} parent=43 // pred_fallthru
        _
    $region44: #{tpu_custom_call.1} parent=5 // pred_fallthru
      _
    %p331 = scmp.le.s32.totalorder 1, %s15
    %p332 = scmp.lt.s32.totalorder %s15, 33
    %p333 = pnand %p331, %p332
    %p334 = pneg %p333
    // Predicated region
    $region53: #{tpu_custom_call.1} parent=5 // pred_check
      _
    $region54: #{tpu_custom_call.1} parent=5 // pred_check_branch
      %336 = sbr.rel (%p333) target = $region56
    $region55: #{tpu_custom_call.1} parent=5 // pred_region
      %s337 = ssub.s32 %s15, 1
      %s338 = smul.u32 8, %s26
      %p339 = scmp.lt.s32.totalorder %s25, 1
      %s340 = scalar_select %p339, %s25, 1
      %p341 = scmp.lt.s32.totalorder %s338, 31
      %s342 = scalar_select %p341, %s338, 31
      %s343 = smul.addr %s340, 32
      %s344 = sadd.s32 %s342, %s343
      %s345 = smul.addr %s344, 8
      %s346 = scalar_lea.vmem %s0, %s345
      %p347 = pneg %p62
      %p348 = pneg %p59
      %s349 = smul.u32 8, %s27
      %p350 = scmp.lt.s32.totalorder %s25, 1
      %s351 = scalar_select %p350, %s25, 1
      %p352 = scmp.lt.s32.totalorder %s349, 31
      %s353 = scalar_select %p352, %s349, 31
      %s354 = smul.addr %s351, 32
      %s355 = sadd.s32 %s353, %s354
      %s356 = smul.addr %s355, 8
      %s357 = scalar_lea.vmem %s1, %s356
      %p358 = pneg %p90
      %p359 = pneg %p87
      %p360 = pneg %p111
      %p361 = pneg %p108
      %p362 = pneg %p132
      %p363 = pneg %p129
      %p364 = pneg %p153
      %p365 = pneg %p150
      %p366 = pneg %p174
      %p367 = pneg %p171
      %p368 = pneg %p195
      %p369 = pneg %p192
      %p370 = pneg %p216
      %p371 = pneg %p213
      %p372 = pneg %p237
      %p373 = pneg %p234
      %p374 = pneg %p265
      %p375 = pneg %p262
      %s376 = smul.u32 8, %s26
      %p377 = scmp.lt.s32.totalorder %s25, 1
      %s378 = scalar_select %p377, %s25, 1
      %p379 = scmp.lt.s32.totalorder %s376, 31
      %s380 = scalar_select %p379, %s376, 31
      %s381 = smul.addr %s378, 32
      %s382 = sadd.s32 %s380, %s381
      %s383 = smul.addr %s382, 8
      %s384 = scalar_lea.vmem %s9, %s383
      %s385 = smul.u32 8, %s26
      %p386 = scmp.lt.s32.totalorder %s25, 1
      %s387 = scalar_select %p386, %s25, 1
      %p388 = scmp.lt.s32.totalorder %s385, 31
      %s389 = scalar_select %p388, %s385, 31
      %s390 = smul.addr %s387, 32
      %s391 = sadd.s32 %s389, %s390
      %s392 = smul.addr %s391, 8
      %s393 = scalar_lea.vmem %s0, %s392
      %s394 = smul.u32 8, %s26
      %s395 = smul.u32 8, %s27
      %p396 = scmp.lt.s32.totalorder %s25, 1
      %s397 = scalar_select %p396, %s25, 1
      %p398 = scmp.lt.s32.totalorder %s395, 31
      %s399 = scalar_select %p398, %s395, 31
      %s400 = smul.addr %s397, 32
      %s401 = sadd.s32 %s399, %s400
      %s402 = smul.addr %s401, 8
      %s403 = scalar_lea.vmem %s1, %s402
      %s404 = smul.u32 8, %s27
      %s405 = smul.u32 8, %s26
      %p406 = scmp.lt.s32.totalorder %s25, 1
      %s407 = scalar_select %p406, %s25, 1
      %p408 = scmp.lt.s32.totalorder %s405, 31
      %s409 = scalar_select %p408, %s405, 31
      %s410 = smul.addr %s407, 32
      %s411 = sadd.s32 %s409, %s410
      %s412 = smul.addr %s411, 8
      %s413 = scalar_lea.vmem %s9, %s412
      %s414 = smul.u32 8, %s26
      %v415 = vld [vmem:[%s6] sm:$0x1]
      %v416 = vld [vmem:[%s8] sm:$0x1]
      %p417 = scmp.eq.s32.totalorder %s27, 0
      // Predicated region
      $region57: #{tpu_custom_call.1} parent=55 // pred_check
        %p418 = pneg %p417
      $region58: #{tpu_custom_call.1} parent=55 // pred_check_branch
        %420 = sbr.rel (%p418) target = $region60
      $region59: #{tpu_custom_call.1} parent=55 // pred_region
        %v421 = vld [vmem:[%s393] sm:$0xff]
        %v422 = vld [vmem:[%s393 + $0x8] sm:$0xff]
        %v423 = vld [vmem:[%s393 + $0x10] sm:$0xff]
        %v424 = vld [vmem:[%s393 + $0x18] sm:$0xff]
        %v425 = vld [vmem:[%s393 + $0x20] sm:$0xff]
        %v426 = vld [vmem:[%s393 + $0x28] sm:$0xff]
        %v427 = vld [vmem:[%s393 + $0x30] sm:$0xff]
        %v428 = vld [vmem:[%s393 + $0x38] sm:$0xff]
        %v429 = vmul.f32 %v421, %v421
        %v430 = vmul.f32 %v422, %v422
        %v431 = vmul.f32 %v423, %v423
        %v432 = vmul.f32 %v424, %v424
        %v433 = vmul.f32 %v425, %v425
        %v434 = vmul.f32 %v426, %v426
        %v435 = vmul.f32 %v427, %v427
        %v436 = vmul.f32 %v428, %v428
        %vm437 = vcmask 64512
        %v438 = vsel %vm437, %v429, 0.0
        %439 = vadd.xlane.f32.xlu0 %v438
        %v440 = vpop.xlane.xlu0 %439
        %v441 = vsel %vm437, %v430, 0.0
        %442 = vadd.xlane.f32.xlu0 %v441
        %v443 = vpop.xlane.xlu0 %442
        %v444 = vsel %vm437, %v431, 0.0
        %445 = vadd.xlane.f32.xlu0 %v444
        %v446 = vpop.xlane.xlu0 %445
        %v447 = vsel %vm437, %v432, 0.0
        %448 = vadd.xlane.f32.xlu0 %v447
        %v449 = vpop.xlane.xlu0 %448
        %v450 = vsel %vm437, %v433, 0.0
        %451 = vadd.xlane.f32.xlu0 %v450
        %v452 = vpop.xlane.xlu0 %451
        %v453 = vsel %vm437, %v434, 0.0
        %454 = vadd.xlane.f32.xlu0 %v453
        %v455 = vpop.xlane.xlu0 %454
        %v456 = vsel %vm437, %v435, 0.0
        %457 = vadd.xlane.f32.xlu0 %v456
        %v458 = vpop.xlane.xlu0 %457
        %v459 = vsel %vm437, %v436, 0.0
        %460 = vadd.xlane.f32.xlu0 %v459
        %v461 = vpop.xlane.xlu0 %460
        %v462 = vmax.f32 %v440, 1e-24
        %v463 = vmax.f32 %v443, 1e-24
        %v464 = vmax.f32 %v446, 1e-24
        %v465 = vmax.f32 %v449, 1e-24
        %v466 = vmax.f32 %v452, 1e-24
        %v467 = vmax.f32 %v455, 1e-24
        %v468 = vmax.f32 %v458, 1e-24
        %v469 = vmax.f32 %v461, 1e-24
        %v470 = vrsqrt.pop %v462
        %v471 = vmul.f32 %v470, %v462
        %v472 = vmul.f32 %v471, %v470
        %v473 = vmul.f32 0.5, %v472
        %v474 = vsub.f32 1.5, %v473
        %v475 = vmul.f32 %v470, %v474
        %vm476 = vweird.f32 %v462
        %vm477 = vweird.f32 %v470
        %vm478 = vmor %vm476, %vm477
        %v479 = vsel %vm478, %v470, %v475
        %v480 = vrsqrt.pop %v463
        %v481 = vmul.f32 %v480, %v463
        %v482 = vmul.f32 %v481, %v480
        %v483 = vmul.f32 0.5, %v482
        %v484 = vsub.f32 1.5, %v483
        %v485 = vmul.f32 %v480, %v484
        %vm486 = vweird.f32 %v463
        %vm487 = vweird.f32 %v480
        %vm488 = vmor %vm486, %vm487
        %v489 = vsel %vm488, %v480, %v485
        %v490 = vrsqrt.pop %v464
        %v491 = vmul.f32 %v490, %v464
        %v492 = vmul.f32 %v491, %v490
        %v493 = vmul.f32 0.5, %v492
        %v494 = vsub.f32 1.5, %v493
        %v495 = vmul.f32 %v490, %v494
        %vm496 = vweird.f32 %v464
        %vm497 = vweird.f32 %v490
        %vm498 = vmor %vm496, %vm497
        %v499 = vsel %vm498, %v490, %v495
        %v500 = vrsqrt.pop %v465
        %v501 = vmul.f32 %v500, %v465
        %v502 = vmul.f32 %v501, %v500
        %v503 = vmul.f32 0.5, %v502
        %v504 = vsub.f32 1.5, %v503
        %v505 = vmul.f32 %v500, %v504
        %vm506 = vweird.f32 %v465
        %vm507 = vweird.f32 %v500
        %vm508 = vmor %vm506, %vm507
        %v509 = vsel %vm508, %v500, %v505
        %v510 = vrsqrt.pop %v466
        %v511 = vmul.f32 %v510, %v466
        %v512 = vmul.f32 %v511, %v510
        %v513 = vmul.f32 0.5, %v512
        %v514 = vsub.f32 1.5, %v513
        %v515 = vmul.f32 %v510, %v514
        %vm516 = vweird.f32 %v466
        %vm517 = vweird.f32 %v510
        %vm518 = vmor %vm516, %vm517
        %v519 = vsel %vm518, %v510, %v515
        %v520 = vrsqrt.pop %v467
        %v521 = vmul.f32 %v520, %v467
        %v522 = vmul.f32 %v521, %v520
        %v523 = vmul.f32 0.5, %v522
        %v524 = vsub.f32 1.5, %v523
        %v525 = vmul.f32 %v520, %v524
        %vm526 = vweird.f32 %v467
        %vm527 = vweird.f32 %v520
        %vm528 = vmor %vm526, %vm527
        %v529 = vsel %vm528, %v520, %v525
        %v530 = vrsqrt.pop %v468
        %v531 = vmul.f32 %v530, %v468
        %v532 = vmul.f32 %v531, %v530
        %v533 = vmul.f32 0.5, %v532
        %v534 = vsub.f32 1.5, %v533
        %v535 = vmul.f32 %v530, %v534
        %vm536 = vweird.f32 %v468
        %vm537 = vweird.f32 %v530
        %vm538 = vmor %vm536, %vm537
        %v539 = vsel %vm538, %v530, %v535
        %v540 = vrsqrt.pop %v469
        %v541 = vmul.f32 %v540, %v469
        %v542 = vmul.f32 %v541, %v540
        %v543 = vmul.f32 0.5, %v542
        %v544 = vsub.f32 1.5, %v543
        %v545 = vmul.f32 %v540, %v544
        %vm546 = vweird.f32 %v469
        %vm547 = vweird.f32 %v540
        %vm548 = vmor %vm546, %vm547
        %v549 = vsel %vm548, %v540, %v545
        %v550 = vmul.f32 %v421, %v479
        %v551 = vmul.f32 %v422, %v489
        %v552 = vmul.f32 %v423, %v499
        %v553 = vmul.f32 %v424, %v509
        %v554 = vmul.f32 %v425, %v519
        %v555 = vmul.f32 %v426, %v529
        %v556 = vmul.f32 %v427, %v539
        %v557 = vmul.f32 %v428, %v549
        %v559 = vperm.slane %v415, 0
        %v561 = vmul.f32 %v550, %v559
        %v562 = vmul.f32 %v551, %v559
        %v563 = vmul.f32 %v552, %v559
        %v564 = vmul.f32 %v553, %v559
        %v565 = vmul.f32 %v554, %v559
        %v566 = vmul.f32 %v555, %v559
        %v567 = vmul.f32 %v556, %v559
        %v568 = vmul.f32 %v557, %v559
        %v569 = vld [vmem:[%s2] sm:$0xff]
        %v571 = vsel %vm437, %v561, 0
        %v574 = vsel %vm437, %v562, 0
        %v577 = vsel %vm437, %v563, 0
        %v580 = vsel %vm437, %v564, 0
        %v583 = vsel %vm437, %v565, 0
        %v586 = vsel %vm437, %v566, 0
        %v589 = vsel %vm437, %v567, 0
        %v592 = vsel %vm437, %v568, 0
        %594 = vmatpush.msra.mxu0 0.0
        %595 = vmatpush.msra.mxu0 0.0
        %596 = vmatpush.msra.mxu0 0.0
        %597 = vmatpush.msra.mxu0 0.0
        %598 = vmatpush.msra.mxu0 0.0
        %599 = vmatpush.msra.mxu0 0.0
        %600 = vmatpush.msra.mxu0 0.0
        %601 = vmatpush.msra.mxu0 0.0
        %602 = vmatpush.msra.mxu0 0.0
        %603 = vmatpush.msra.mxu0 0.0
        %604 = vmatpush.msra.mxu0 0.0
        %605 = vmatpush.msra.mxu0 0.0
        %606 = vmatpush.msra.mxu0 0.0
        %607 = vmatpush.msra.mxu0 0.0
        %608 = vmatpush.msra.mxu0 0.0
        %609 = vmatpush.msra.mxu0 %v569
        %610 = vmatmul.f32.gmra.mxu0 %v571
        %v611 = vpop.f32.mrf.mxu0
        %v612 = vadd.f32 0.0, %v611
        %613 = vmatmul.f32.gmra.mxu0 %v574
        %v614 = vpop.f32.mrf.mxu0
        %v615 = vadd.f32 0.0, %v614
        %616 = vmatmul.f32.gmra.mxu0 %v577
        %v617 = vpop.f32.mrf.mxu0
        %v618 = vadd.f32 0.0, %v617
        %619 = vmatmul.f32.gmra.mxu0 %v580
        %v620 = vpop.f32.mrf.mxu0
        %v621 = vadd.f32 0.0, %v620
        %622 = vmatmul.f32.gmra.mxu0 %v583
        %v623 = vpop.f32.mrf.mxu0
        %v624 = vadd.f32 0.0, %v623
        %625 = vmatmul.f32.gmra.mxu0 %v586
        %v626 = vpop.f32.mrf.mxu0
        %v627 = vadd.f32 0.0, %v626
        %628 = vmatmul.f32.gmra.mxu0 %v589
        %v629 = vpop.f32.mrf.mxu0
        %v630 = vadd.f32 0.0, %v629
        %631 = vmatmul.f32.gmra.mxu0 %v592
        %v632 = vpop.f32.mrf.mxu0
        %v633 = vadd.f32 0.0, %v632
        %634 = vdwg.mxu0
        %vm635 = vcmask 130048
        %636 = vst.msk [vmem:[#allocation2] sm:$0xff] %vm635, %v612
        %637 = vst.msk [vmem:[#allocation2 + $0x8] sm:$0xff] %vm635, %v615
        %638 = vst.msk [vmem:[#allocation2 + $0x10] sm:$0xff] %vm635, %v618
        %639 = vst.msk [vmem:[#allocation2 + $0x18] sm:$0xff] %vm635, %v621
        %640 = vst.msk [vmem:[#allocation2 + $0x20] sm:$0xff] %vm635, %v624
        %641 = vst.msk [vmem:[#allocation2 + $0x28] sm:$0xff] %vm635, %v627
        %642 = vst.msk [vmem:[#allocation2 + $0x30] sm:$0xff] %vm635, %v630
        %643 = vst.msk [vmem:[#allocation2 + $0x38] sm:$0xff] %vm635, %v633
        %s644 = scalar_lea.vmem %s2, 8
        %v645 = vld [vmem:[%s644] sm:$0xff]
        %646 = vmatpush.msra.mxu0 0.0
        %647 = vmatpush.msra.mxu0 0.0
        %648 = vmatpush.msra.mxu0 0.0
        %649 = vmatpush.msra.mxu0 0.0
        %650 = vmatpush.msra.mxu0 0.0
        %651 = vmatpush.msra.mxu0 0.0
        %652 = vmatpush.msra.mxu0 0.0
        %653 = vmatpush.msra.mxu0 0.0
        %654 = vmatpush.msra.mxu0 0.0
        %655 = vmatpush.msra.mxu0 0.0
        %656 = vmatpush.msra.mxu0 0.0
        %657 = vmatpush.msra.mxu0 0.0
        %658 = vmatpush.msra.mxu0 0.0
        %659 = vmatpush.msra.mxu0 0.0
        %660 = vmatpush.msra.mxu0 0.0
        %661 = vmatpush.msra.mxu0 %v645
        %662 = vmatmul.f32.gmra.mxu0 %v571
        %v663 = vpop.f32.mrf.mxu0
        %v664 = vadd.f32 0.0, %v663
        %665 = vmatmul.f32.gmra.mxu0 %v574
        %v666 = vpop.f32.mrf.mxu0
        %v667 = vadd.f32 0.0, %v666
        %668 = vmatmul.f32.gmra.mxu0 %v577
        %v669 = vpop.f32.mrf.mxu0
        %v670 = vadd.f32 0.0, %v669
        %671 = vmatmul.f32.gmra.mxu0 %v580
        %v672 = vpop.f32.mrf.mxu0
        %v673 = vadd.f32 0.0, %v672
        %674 = vmatmul.f32.gmra.mxu0 %v583
        %v675 = vpop.f32.mrf.mxu0
        %v676 = vadd.f32 0.0, %v675
        %677 = vmatmul.f32.gmra.mxu0 %v586
        %v678 = vpop.f32.mrf.mxu0
        %v679 = vadd.f32 0.0, %v678
        %680 = vmatmul.f32.gmra.mxu0 %v589
        %v681 = vpop.f32.mrf.mxu0
        %v682 = vadd.f32 0.0, %v681
        %683 = vmatmul.f32.gmra.mxu0 %v592
        %v684 = vpop.f32.mrf.mxu0
        %v685 = vadd.f32 0.0, %v684
        %686 = vdwg.mxu0
        %s687 = scalar_lea.vmem [#allocation2], 64
        %688 = vst.msk [vmem:[%s687] sm:$0xff] %vm635, %v664
        %689 = vst.msk [vmem:[%s687 + $0x8] sm:$0xff] %vm635, %v667
        %690 = vst.msk [vmem:[%s687 + $0x10] sm:$0xff] %vm635, %v670
        %691 = vst.msk [vmem:[%s687 + $0x18] sm:$0xff] %vm635, %v673
        %692 = vst.msk [vmem:[%s687 + $0x20] sm:$0xff] %vm635, %v676
        %693 = vst.msk [vmem:[%s687 + $0x28] sm:$0xff] %vm635, %v679
        %694 = vst.msk [vmem:[%s687 + $0x30] sm:$0xff] %vm635, %v682
        %695 = vst.msk [vmem:[%s687 + $0x38] sm:$0xff] %vm635, %v685
        %vm696 = vcmask 7168
        %697 = vst.msk [vmem:[#allocation3] sm:$0xff] %vm696, -inf
        %698 = vst.msk [vmem:[#allocation3 + $0x8] sm:$0xff] %vm696, -inf
        %699 = vst.msk [vmem:[#allocation3 + $0x10] sm:$0xff] %vm696, -inf
        %700 = vst.msk [vmem:[#allocation3 + $0x18] sm:$0xff] %vm696, -inf
        %701 = vst.msk [vmem:[#allocation3 + $0x20] sm:$0xff] %vm696, -inf
        %702 = vst.msk [vmem:[#allocation3 + $0x28] sm:$0xff] %vm696, -inf
        %703 = vst.msk [vmem:[#allocation3 + $0x30] sm:$0xff] %vm696, -inf
        %704 = vst.msk [vmem:[#allocation3 + $0x38] sm:$0xff] %vm696, -inf
        %705 = vst.msk [vmem:[#allocation3 + $0x40] sm:$0xff] %vm696, -inf
        %706 = vst.msk [vmem:[#allocation3 + $0x48] sm:$0xff] %vm696, -inf
        %707 = vst.msk [vmem:[#allocation3 + $0x50] sm:$0xff] %vm696, -inf
        %708 = vst.msk [vmem:[#allocation3 + $0x58] sm:$0xff] %vm696, -inf
        %709 = vst.msk [vmem:[#allocation3 + $0x60] sm:$0xff] %vm696, -inf
        %710 = vst.msk [vmem:[#allocation3 + $0x68] sm:$0xff] %vm696, -inf
        %711 = vst.msk [vmem:[#allocation3 + $0x70] sm:$0xff] %vm696, -inf
        %712 = vst.msk [vmem:[#allocation3 + $0x78] sm:$0xff] %vm696, -inf
        %713 = vst.msk [vmem:[#allocation4] sm:$0xff] %vm696, 0.0
        %714 = vst.msk [vmem:[#allocation4 + $0x8] sm:$0xff] %vm696, 0.0
        %715 = vst.msk [vmem:[#allocation4 + $0x10] sm:$0xff] %vm696, 0.0
        %716 = vst.msk [vmem:[#allocation4 + $0x18] sm:$0xff] %vm696, 0.0
        %717 = vst.msk [vmem:[#allocation4 + $0x20] sm:$0xff] %vm696, 0.0
        %718 = vst.msk [vmem:[#allocation4 + $0x28] sm:$0xff] %vm696, 0.0
        %719 = vst.msk [vmem:[#allocation4 + $0x30] sm:$0xff] %vm696, 0.0
        %720 = vst.msk [vmem:[#allocation4 + $0x38] sm:$0xff] %vm696, 0.0
        %721 = vst.msk [vmem:[#allocation4 + $0x40] sm:$0xff] %vm696, 0.0
        %722 = vst.msk [vmem:[#allocation4 + $0x48] sm:$0xff] %vm696, 0.0
        %723 = vst.msk [vmem:[#allocation4 + $0x50] sm:$0xff] %vm696, 0.0
        %724 = vst.msk [vmem:[#allocation4 + $0x58] sm:$0xff] %vm696, 0.0
        %725 = vst.msk [vmem:[#allocation4 + $0x60] sm:$0xff] %vm696, 0.0
        %726 = vst.msk [vmem:[#allocation4 + $0x68] sm:$0xff] %vm696, 0.0
        %727 = vst.msk [vmem:[#allocation4 + $0x70] sm:$0xff] %vm696, 0.0
        %728 = vst.msk [vmem:[#allocation4 + $0x78] sm:$0xff] %vm696, 0.0
        %729 = vst.msk [vmem:[#allocation5] sm:$0xff] %vm635, 0.0
        %730 = vst.msk [vmem:[#allocation5 + $0x8] sm:$0xff] %vm635, 0.0
        %731 = vst.msk [vmem:[#allocation5 + $0x10] sm:$0xff] %vm635, 0.0
        %732 = vst.msk [vmem:[#allocation5 + $0x18] sm:$0xff] %vm635, 0.0
        %733 = vst.msk [vmem:[#allocation5 + $0x20] sm:$0xff] %vm635, 0.0
        %734 = vst.msk [vmem:[#allocation5 + $0x28] sm:$0xff] %vm635, 0.0
        %735 = vst.msk [vmem:[#allocation5 + $0x30] sm:$0xff] %vm635, 0.0
        %736 = vst.msk [vmem:[#allocation5 + $0x38] sm:$0xff] %vm635, 0.0
        %737 = vst.msk [vmem:[#allocation5 + $0x40] sm:$0xff] %vm635, 0.0
        %738 = vst.msk [vmem:[#allocation5 + $0x48] sm:$0xff] %vm635, 0.0
        %739 = vst.msk [vmem:[#allocation5 + $0x50] sm:$0xff] %vm635, 0.0
        %740 = vst.msk [vmem:[#allocation5 + $0x58] sm:$0xff] %vm635, 0.0
        %741 = vst.msk [vmem:[#allocation5 + $0x60] sm:$0xff] %vm635, 0.0
        %742 = vst.msk [vmem:[#allocation5 + $0x68] sm:$0xff] %vm635, 0.0
        %743 = vst.msk [vmem:[#allocation5 + $0x70] sm:$0xff] %vm635, 0.0
        %744 = vst.msk [vmem:[#allocation5 + $0x78] sm:$0xff] %vm635, 0.0
      $region60: #{tpu_custom_call.1} parent=55 // pred_fallthru
        _
      %v745 = vld [vmem:[%s403] sm:$0xff]
      %v746 = vld [vmem:[%s403 + $0x8] sm:$0xff]
      %v747 = vld [vmem:[%s403 + $0x10] sm:$0xff]
      %v748 = vld [vmem:[%s403 + $0x18] sm:$0xff]
      %v749 = vld [vmem:[%s403 + $0x20] sm:$0xff]
      %v750 = vld [vmem:[%s403 + $0x28] sm:$0xff]
      %v751 = vld [vmem:[%s403 + $0x30] sm:$0xff]
      %v752 = vld [vmem:[%s403 + $0x38] sm:$0xff]
      %v753 = vmul.f32 %v745, %v745
      %v754 = vmul.f32 %v746, %v746
      %v755 = vmul.f32 %v747, %v747
      %v756 = vmul.f32 %v748, %v748
      %v757 = vmul.f32 %v749, %v749
      %v758 = vmul.f32 %v750, %v750
      %v759 = vmul.f32 %v751, %v751
      %v760 = vmul.f32 %v752, %v752
      %vm761 = vcmask 64512
      %v762 = vsel %vm761, %v753, 0.0
      %763 = vadd.xlane.f32.xlu0 %v762
      %v764 = vpop.xlane.xlu0 %763
      %v765 = vsel %vm761, %v754, 0.0
      %766 = vadd.xlane.f32.xlu0 %v765
      %v767 = vpop.xlane.xlu0 %766
      %v768 = vsel %vm761, %v755, 0.0
      %769 = vadd.xlane.f32.xlu0 %v768
      %v770 = vpop.xlane.xlu0 %769
      %v771 = vsel %vm761, %v756, 0.0
      %772 = vadd.xlane.f32.xlu0 %v771
      %v773 = vpop.xlane.xlu0 %772
      %v774 = vsel %vm761, %v757, 0.0
      %775 = vadd.xlane.f32.xlu0 %v774
      %v776 = vpop.xlane.xlu0 %775
      %v777 = vsel %vm761, %v758, 0.0
      %778 = vadd.xlane.f32.xlu0 %v777
      %v779 = vpop.xlane.xlu0 %778
      %v780 = vsel %vm761, %v759, 0.0
      %781 = vadd.xlane.f32.xlu0 %v780
      %v782 = vpop.xlane.xlu0 %781
      %v783 = vsel %vm761, %v760, 0.0
      %784 = vadd.xlane.f32.xlu0 %v783
      %v785 = vpop.xlane.xlu0 %784
      %v786 = vmax.f32 %v764, 1e-24
      %v787 = vmax.f32 %v767, 1e-24
      %v788 = vmax.f32 %v770, 1e-24
      %v789 = vmax.f32 %v773, 1e-24
      %v790 = vmax.f32 %v776, 1e-24
      %v791 = vmax.f32 %v779, 1e-24
      %v792 = vmax.f32 %v782, 1e-24
      %v793 = vmax.f32 %v785, 1e-24
      %v794 = vrsqrt.pop %v786
      %v795 = vmul.f32 %v794, %v786
      %v796 = vmul.f32 %v795, %v794
      %v797 = vmul.f32 0.5, %v796
      %v798 = vsub.f32 1.5, %v797
      %v799 = vmul.f32 %v794, %v798
      %vm800 = vweird.f32 %v786
      %vm801 = vweird.f32 %v794
      %vm802 = vmor %vm800, %vm801
      %v803 = vsel %vm802, %v794, %v799
      %v804 = vrsqrt.pop %v787
      %v805 = vmul.f32 %v804, %v787
      %v806 = vmul.f32 %v805, %v804
      %v807 = vmul.f32 0.5, %v806
      %v808 = vsub.f32 1.5, %v807
      %v809 = vmul.f32 %v804, %v808
      %vm810 = vweird.f32 %v787
      %vm811 = vweird.f32 %v804
      %vm812 = vmor %vm810, %vm811
      %v813 = vsel %vm812, %v804, %v809
      %v814 = vrsqrt.pop %v788
      %v815 = vmul.f32 %v814, %v788
      %v816 = vmul.f32 %v815, %v814
      %v817 = vmul.f32 0.5, %v816
      %v818 = vsub.f32 1.5, %v817
      %v819 = vmul.f32 %v814, %v818
      %vm820 = vweird.f32 %v788
      %vm821 = vweird.f32 %v814
      %vm822 = vmor %vm820, %vm821
      %v823 = vsel %vm822, %v814, %v819
      %v824 = vrsqrt.pop %v789
      %v825 = vmul.f32 %v824, %v789
      %v826 = vmul.f32 %v825, %v824
      %v827 = vmul.f32 0.5, %v826
      %v828 = vsub.f32 1.5, %v827
      %v829 = vmul.f32 %v824, %v828
      %vm830 = vweird.f32 %v789
      %vm831 = vweird.f32 %v824
      %vm832 = vmor %vm830, %vm831
      %v833 = vsel %vm832, %v824, %v829
      %v834 = vrsqrt.pop %v790
      %v835 = vmul.f32 %v834, %v790
      %v836 = vmul.f32 %v835, %v834
      %v837 = vmul.f32 0.5, %v836
      %v838 = vsub.f32 1.5, %v837
      %v839 = vmul.f32 %v834, %v838
      %vm840 = vweird.f32 %v790
      %vm841 = vweird.f32 %v834
      %vm842 = vmor %vm840, %vm841
      %v843 = vsel %vm842, %v834, %v839
      %v844 = vrsqrt.pop %v791
      %v845 = vmul.f32 %v844, %v791
      %v846 = vmul.f32 %v845, %v844
      %v847 = vmul.f32 0.5, %v846
      %v848 = vsub.f32 1.5, %v847
      %v849 = vmul.f32 %v844, %v848
      %vm850 = vweird.f32 %v791
      %vm851 = vweird.f32 %v844
      %vm852 = vmor %vm850, %vm851
      %v853 = vsel %vm852, %v844, %v849
      %v854 = vrsqrt.pop %v792
      %v855 = vmul.f32 %v854, %v792
      %v856 = vmul.f32 %v855, %v854
      %v857 = vmul.f32 0.5, %v856
      %v858 = vsub.f32 1.5, %v857
      %v859 = vmul.f32 %v854, %v858
      %vm860 = vweird.f32 %v792
      %vm861 = vweird.f32 %v854
      %vm862 = vmor %vm860, %vm861
      %v863 = vsel %vm862, %v854, %v859
      %v864 = vrsqrt.pop %v793
      %v865 = vmul.f32 %v864, %v793
      %v866 = vmul.f32 %v865, %v864
      %v867 = vmul.f32 0.5, %v866
      %v868 = vsub.f32 1.5, %v867
      %v869 = vmul.f32 %v864, %v868
      %vm870 = vweird.f32 %v793
      %vm871 = vweird.f32 %v864
      %vm872 = vmor %vm870, %vm871
      %v873 = vsel %vm872, %v864, %v869
      %v874 = vmul.f32 %v745, %v803
      %v875 = vmul.f32 %v746, %v813
      %v876 = vmul.f32 %v747, %v823
      %v877 = vmul.f32 %v748, %v833
      %v878 = vmul.f32 %v749, %v843
      %v879 = vmul.f32 %v750, %v853
      %v880 = vmul.f32 %v751, %v863
      %v881 = vmul.f32 %v752, %v873
      %v883 = vperm.slane %v415, 0
      %v885 = vmul.f32 %v874, %v883
      %v886 = vmul.f32 %v875, %v883
      %v887 = vmul.f32 %v876, %v883
      %v888 = vmul.f32 %v877, %v883
      %v889 = vmul.f32 %v878, %v883
      %v890 = vmul.f32 %v879, %v883
      %v891 = vmul.f32 %v880, %v883
      %v892 = vmul.f32 %v881, %v883
      %v893 = vld [vmem:[%s3] sm:$0xff]
      %v895 = vsel %vm761, %v885, 0
      %v898 = vsel %vm761, %v886, 0
      %v901 = vsel %vm761, %v887, 0
      %v904 = vsel %vm761, %v888, 0
      %v907 = vsel %vm761, %v889, 0
      %v910 = vsel %vm761, %v890, 0
      %v913 = vsel %vm761, %v891, 0
      %v916 = vsel %vm761, %v892, 0
      %918 = vmatpush.msra.mxu0 0.0
      %919 = vmatpush.msra.mxu0 0.0
      %920 = vmatpush.msra.mxu0 0.0
      %921 = vmatpush.msra.mxu0 0.0
      %922 = vmatpush.msra.mxu0 0.0
      %923 = vmatpush.msra.mxu0 0.0
      %924 = vmatpush.msra.mxu0 0.0
      %925 = vmatpush.msra.mxu0 0.0
      %926 = vmatpush.msra.mxu0 0.0
      %927 = vmatpush.msra.mxu0 0.0
      %928 = vmatpush.msra.mxu0 0.0
      %929 = vmatpush.msra.mxu0 0.0
      %930 = vmatpush.msra.mxu0 0.0
      %931 = vmatpush.msra.mxu0 0.0
      %932 = vmatpush.msra.mxu0 0.0
      %933 = vmatpush.msra.mxu0 %v893
      %934 = vmatmul.f32.gmra.mxu0 %v895
      %v935 = vpop.f32.mrf.mxu0
      %v936 = vadd.f32 0.0, %v935
      %937 = vmatmul.f32.gmra.mxu0 %v898
      %v938 = vpop.f32.mrf.mxu0
      %v939 = vadd.f32 0.0, %v938
      %940 = vmatmul.f32.gmra.mxu0 %v901
      %v941 = vpop.f32.mrf.mxu0
      %v942 = vadd.f32 0.0, %v941
      %943 = vmatmul.f32.gmra.mxu0 %v904
      %v944 = vpop.f32.mrf.mxu0
      %v945 = vadd.f32 0.0, %v944
      %946 = vmatmul.f32.gmra.mxu0 %v907
      %v947 = vpop.f32.mrf.mxu0
      %v948 = vadd.f32 0.0, %v947
      %949 = vmatmul.f32.gmra.mxu0 %v910
      %v950 = vpop.f32.mrf.mxu0
      %v951 = vadd.f32 0.0, %v950
      %952 = vmatmul.f32.gmra.mxu0 %v913
      %v953 = vpop.f32.mrf.mxu0
      %v954 = vadd.f32 0.0, %v953
      %955 = vmatmul.f32.gmra.mxu0 %v916
      %v956 = vpop.f32.mrf.mxu0
      %v957 = vadd.f32 0.0, %v956
      %958 = vdwg.mxu0
      %v959 = vld [vmem:[%s4] sm:$0xff]
      %960 = vmatpush.msra.mxu0 0.0
      %961 = vmatpush.msra.mxu0 0.0
      %962 = vmatpush.msra.mxu0 0.0
      %963 = vmatpush.msra.mxu0 0.0
      %964 = vmatpush.msra.mxu0 0.0
      %965 = vmatpush.msra.mxu0 0.0
      %966 = vmatpush.msra.mxu0 0.0
      %967 = vmatpush.msra.mxu0 0.0
      %968 = vmatpush.msra.mxu0 0.0
      %969 = vmatpush.msra.mxu0 0.0
      %970 = vmatpush.msra.mxu0 0.0
      %971 = vmatpush.msra.mxu0 0.0
      %972 = vmatpush.msra.mxu0 0.0
      %973 = vmatpush.msra.mxu0 0.0
      %974 = vmatpush.msra.mxu0 0.0
      %975 = vmatpush.msra.mxu0 %v959
      %976 = vmatmul.f32.gmra.mxu0 %v895
      %v977 = vpop.f32.mrf.mxu0
      %v978 = vadd.f32 0.0, %v977
      %979 = vmatmul.f32.gmra.mxu0 %v898
      %v980 = vpop.f32.mrf.mxu0
      %v981 = vadd.f32 0.0, %v980
      %982 = vmatmul.f32.gmra.mxu0 %v901
      %v983 = vpop.f32.mrf.mxu0
      %v984 = vadd.f32 0.0, %v983
      %985 = vmatmul.f32.gmra.mxu0 %v904
      %v986 = vpop.f32.mrf.mxu0
      %v987 = vadd.f32 0.0, %v986
      %988 = vmatmul.f32.gmra.mxu0 %v907
      %v989 = vpop.f32.mrf.mxu0
      %v990 = vadd.f32 0.0, %v989
      %991 = vmatmul.f32.gmra.mxu0 %v910
      %v992 = vpop.f32.mrf.mxu0
      %v993 = vadd.f32 0.0, %v992
      %994 = vmatmul.f32.gmra.mxu0 %v913
      %v995 = vpop.f32.mrf.mxu0
      %v996 = vadd.f32 0.0, %v995
      %997 = vmatmul.f32.gmra.mxu0 %v916
      %v998 = vpop.f32.mrf.mxu0
      %v999 = vadd.f32 0.0, %v998
      %1000 = vdwg.mxu0
      %v1001 = vld [vmem:[#allocation2] sm:$0xff]
      %v1002 = vld [vmem:[#allocation2 + $0x8] sm:$0xff]
      %v1003 = vld [vmem:[#allocation2 + $0x10] sm:$0xff]
      %v1004 = vld [vmem:[#allocation2 + $0x18] sm:$0xff]
      %v1005 = vld [vmem:[#allocation2 + $0x20] sm:$0xff]
      %v1006 = vld [vmem:[#allocation2 + $0x28] sm:$0xff]
      %v1007 = vld [vmem:[#allocation2 + $0x30] sm:$0xff]
      %v1008 = vld [vmem:[#allocation2 + $0x38] sm:$0xff]
      %vm1009 = vcmask 130048
      %v1011 = vsel %vm1009, %v1001, 0
      %v1014 = vsel %vm1009, %v1002, 0
      %v1017 = vsel %vm1009, %v1003, 0
      %v1020 = vsel %vm1009, %v1004, 0
      %v1023 = vsel %vm1009, %v1005, 0
      %v1026 = vsel %vm1009, %v1006, 0
      %v1029 = vsel %vm1009, %v1007, 0
      %v1032 = vsel %vm1009, %v1008, 0
      %v1035 = vsel %vm1009, %v936, 0
      %v1038 = vsel %vm1009, %v939, 0
      %v1041 = vsel %vm1009, %v942, 0
      %v1044 = vsel %vm1009, %v945, 0
      %v1047 = vsel %vm1009, %v948, 0
      %v1050 = vsel %vm1009, %v951, 0
      %v1053 = vsel %vm1009, %v954, 0
      %v1056 = vsel %vm1009, %v957, 0
      %1058 = vmatpush.xpose.msra.mxu0 0.0
      %1059 = vmatpush.xpose.msra.mxu0 0.0
      %1060 = vmatpush.xpose.msra.mxu0 0.0
      %1061 = vmatpush.xpose.msra.mxu0 0.0
      %1062 = vmatpush.xpose.msra.mxu0 0.0
      %1063 = vmatpush.xpose.msra.mxu0 0.0
      %1064 = vmatpush.xpose.msra.mxu0 0.0
      %1065 = vmatpush.xpose.msra.mxu0 0.0
      %1066 = vmatpush.xpose.msra.mxu0 %v1056
      %1067 = vmatpush.xpose.msra.mxu0 %v1053
      %1068 = vmatpush.xpose.msra.mxu0 %v1050
      %1069 = vmatpush.xpose.msra.mxu0 %v1047
      %1070 = vmatpush.xpose.msra.mxu0 %v1044
      %1071 = vmatpush.xpose.msra.mxu0 %v1041
      %1072 = vmatpush.xpose.msra.mxu0 %v1038
      %1073 = vmatpush.xpose.msra.mxu0 %v1035
      %1074 = vmatmul.f32.gmra.mxu0 %v1011
      %v1075 = vpop.f32.mrf.mxu0
      %v1076 = vadd.f32 0.0, %v1075
      %1077 = vmatmul.f32.gmra.mxu0 %v1014
      %v1078 = vpop.f32.mrf.mxu0
      %v1079 = vadd.f32 0.0, %v1078
      %1080 = vmatmul.f32.gmra.mxu0 %v1017
      %v1081 = vpop.f32.mrf.mxu0
      %v1082 = vadd.f32 0.0, %v1081
      %1083 = vmatmul.f32.gmra.mxu0 %v1020
      %v1084 = vpop.f32.mrf.mxu0
      %v1085 = vadd.f32 0.0, %v1084
      %1086 = vmatmul.f32.gmra.mxu0 %v1023
      %v1087 = vpop.f32.mrf.mxu0
      %v1088 = vadd.f32 0.0, %v1087
      %1089 = vmatmul.f32.gmra.mxu0 %v1026
      %v1090 = vpop.f32.mrf.mxu0
      %v1091 = vadd.f32 0.0, %v1090
      %1092 = vmatmul.f32.gmra.mxu0 %v1029
      %v1093 = vpop.f32.mrf.mxu0
      %v1094 = vadd.f32 0.0, %v1093
      %1095 = vmatmul.f32.gmra.mxu0 %v1032
      %v1096 = vpop.f32.mrf.mxu0
      %v1097 = vadd.f32 0.0, %v1096
      %1098 = vdwg.mxu0
      %v1099 = vld [vmem:[#allocation3] sm:$0xff]
      %v1100 = vld [vmem:[#allocation3 + $0x8] sm:$0xff]
      %v1101 = vld [vmem:[#allocation3 + $0x10] sm:$0xff]
      %v1102 = vld [vmem:[#allocation3 + $0x18] sm:$0xff]
      %v1103 = vld [vmem:[#allocation3 + $0x20] sm:$0xff]
      %v1104 = vld [vmem:[#allocation3 + $0x28] sm:$0xff]
      %v1105 = vld [vmem:[#allocation3 + $0x30] sm:$0xff]
      %v1106 = vld [vmem:[#allocation3 + $0x38] sm:$0xff]
      %vm1107 = vcmask 523264
      %v1108 = vsel %vm1107, %v1076, -inf
      %1109 = vmax.xlane.f32.xlu0 %v1108
      %v1110 = vpop.xlane.xlu0 %1109
      %v1111 = vsel %vm1107, %v1079, -inf
      %1112 = vmax.xlane.f32.xlu0 %v1111
      %v1113 = vpop.xlane.xlu0 %1112
      %v1114 = vsel %vm1107, %v1082, -inf
      %1115 = vmax.xlane.f32.xlu0 %v1114
      %v1116 = vpop.xlane.xlu0 %1115
      %v1117 = vsel %vm1107, %v1085, -inf
      %1118 = vmax.xlane.f32.xlu0 %v1117
      %v1119 = vpop.xlane.xlu0 %1118
      %v1120 = vsel %vm1107, %v1088, -inf
      %1121 = vmax.xlane.f32.xlu0 %v1120
      %v1122 = vpop.xlane.xlu0 %1121
      %v1123 = vsel %vm1107, %v1091, -inf
      %1124 = vmax.xlane.f32.xlu0 %v1123
      %v1125 = vpop.xlane.xlu0 %1124
      %v1126 = vsel %vm1107, %v1094, -inf
      %1127 = vmax.xlane.f32.xlu0 %v1126
      %v1128 = vpop.xlane.xlu0 %1127
      %v1129 = vsel %vm1107, %v1097, -inf
      %1130 = vmax.xlane.f32.xlu0 %v1129
      %v1131 = vpop.xlane.xlu0 %1130
      %v1132 = vmax.f32 %v1099, %v1110
      %v1133 = vmax.f32 %v1100, %v1113
      %v1134 = vmax.f32 %v1101, %v1116
      %v1135 = vmax.f32 %v1102, %v1119
      %v1136 = vmax.f32 %v1103, %v1122
      %v1137 = vmax.f32 %v1104, %v1125
      %v1138 = vmax.f32 %v1105, %v1128
      %v1139 = vmax.f32 %v1106, %v1131
      %v1140 = vsub.f32 %v1099, %v1132
      %v1141 = vsub.f32 %v1100, %v1133
      %v1142 = vsub.f32 %v1101, %v1134
      %v1143 = vsub.f32 %v1102, %v1135
      %v1144 = vsub.f32 %v1103, %v1136
      %v1145 = vsub.f32 %v1104, %v1137
      %v1146 = vsub.f32 %v1105, %v1138
      %v1147 = vsub.f32 %v1106, %v1139
      %v1148 = vmul.f32 %v1140, 1.442695
      %v1149 = vpow.pop %v1148
      %v1150 = vmul.f32 %v1141, 1.442695
      %v1151 = vpow.pop %v1150
      %v1152 = vmul.f32 %v1142, 1.442695
      %v1153 = vpow.pop %v1152
      %v1154 = vmul.f32 %v1143, 1.442695
      %v1155 = vpow.pop %v1154
      %v1156 = vmul.f32 %v1144, 1.442695
      %v1157 = vpow.pop %v1156
      %v1158 = vmul.f32 %v1145, 1.442695
      %v1159 = vpow.pop %v1158
      %v1160 = vmul.f32 %v1146, 1.442695
      %v1161 = vpow.pop %v1160
      %v1162 = vmul.f32 %v1147, 1.442695
      %v1163 = vpow.pop %v1162
      %1165 = vset.pattern.permute.xlu0 0
      %1166 = vperm.xlu0 %1165, %v1132
      %v1167 = vpop.permute.xlu0 %1166
      %1170 = vset.pattern.permute.xlu0 0
      %1171 = vperm.xlu0 %1170, %v1133
      %v1172 = vpop.permute.xlu0 %1171
      %1175 = vset.pattern.permute.xlu0 0
      %1176 = vperm.xlu0 %1175, %v1134
      %v1177 = vpop.permute.xlu0 %1176
      %1180 = vset.pattern.permute.xlu0 0
      %1181 = vperm.xlu0 %1180, %v1135
      %v1182 = vpop.permute.xlu0 %1181
      %1185 = vset.pattern.permute.xlu0 0
      %1186 = vperm.xlu0 %1185, %v1136
      %v1187 = vpop.permute.xlu0 %1186
      %1190 = vset.pattern.permute.xlu0 0
      %1191 = vperm.xlu0 %1190, %v1137
      %v1192 = vpop.permute.xlu0 %1191
      %1195 = vset.pattern.permute.xlu0 0
      %1196 = vperm.xlu0 %1195, %v1138
      %v1197 = vpop.permute.xlu0 %1196
      %1200 = vset.pattern.permute.xlu0 0
      %1201 = vperm.xlu0 %1200, %v1139
      %v1202 = vpop.permute.xlu0 %1201
      %v1204 = vsub.f32 %v1076, %v1167
      %v1205 = vsub.f32 %v1079, %v1172
      %v1206 = vsub.f32 %v1082, %v1177
      %v1207 = vsub.f32 %v1085, %v1182
      %v1208 = vsub.f32 %v1088, %v1187
      %v1209 = vsub.f32 %v1091, %v1192
      %v1210 = vsub.f32 %v1094, %v1197
      %v1211 = vsub.f32 %v1097, %v1202
      %v1212 = vmul.f32 %v1204, 1.442695
      %v1213 = vpow.pop %v1212
      %v1214 = vmul.f32 %v1205, 1.442695
      %v1215 = vpow.pop %v1214
      %v1216 = vmul.f32 %v1206, 1.442695
      %v1217 = vpow.pop %v1216
      %v1218 = vmul.f32 %v1207, 1.442695
      %v1219 = vpow.pop %v1218
      %v1220 = vmul.f32 %v1208, 1.442695
      %v1221 = vpow.pop %v1220
      %v1222 = vmul.f32 %v1209, 1.442695
      %v1223 = vpow.pop %v1222
      %v1224 = vmul.f32 %v1210, 1.442695
      %v1225 = vpow.pop %v1224
      %v1226 = vmul.f32 %v1211, 1.442695
      %v1227 = vpow.pop %v1226
      %v1228 = vld [vmem:[#allocation4] sm:$0xff]
      %v1229 = vld [vmem:[#allocation4 + $0x8] sm:$0xff]
      %v1230 = vld [vmem:[#allocation4 + $0x10] sm:$0xff]
      %v1231 = vld [vmem:[#allocation4 + $0x18] sm:$0xff]
      %v1232 = vld [vmem:[#allocation4 + $0x20] sm:$0xff]
      %v1233 = vld [vmem:[#allocation4 + $0x28] sm:$0xff]
      %v1234 = vld [vmem:[#allocation4 + $0x30] sm:$0xff]
      %v1235 = vld [vmem:[#allocation4 + $0x38] sm:$0xff]
      %v1236 = vmul.f32 %v1149, %v1228
      %v1237 = vmul.f32 %v1151, %v1229
      %v1238 = vmul.f32 %v1153, %v1230
      %v1239 = vmul.f32 %v1155, %v1231
      %v1240 = vmul.f32 %v1157, %v1232
      %v1241 = vmul.f32 %v1159, %v1233
      %v1242 = vmul.f32 %v1161, %v1234
      %v1243 = vmul.f32 %v1163, %v1235
      %v1244 = vsel %vm1107, %v1213, 0.0
      %1245 = vadd.xlane.f32.xlu0 %v1244
      %v1246 = vpop.xlane.xlu0 %1245
      %v1247 = vsel %vm1107, %v1215, 0.0
      %1248 = vadd.xlane.f32.xlu0 %v1247
      %v1249 = vpop.xlane.xlu0 %1248
      %v1250 = vsel %vm1107, %v1217, 0.0
      %1251 = vadd.xlane.f32.xlu0 %v1250
      %v1252 = vpop.xlane.xlu0 %1251
      %v1253 = vsel %vm1107, %v1219, 0.0
      %1254 = vadd.xlane.f32.xlu0 %v1253
      %v1255 = vpop.xlane.xlu0 %1254
      %v1256 = vsel %vm1107, %v1221, 0.0
      %1257 = vadd.xlane.f32.xlu0 %v1256
      %v1258 = vpop.xlane.xlu0 %1257
      %v1259 = vsel %vm1107, %v1223, 0.0
      %1260 = vadd.xlane.f32.xlu0 %v1259
      %v1261 = vpop.xlane.xlu0 %1260
      %v1262 = vsel %vm1107, %v1225, 0.0
      %1263 = vadd.xlane.f32.xlu0 %v1262
      %v1264 = vpop.xlane.xlu0 %1263
      %v1265 = vsel %vm1107, %v1227, 0.0
      %1266 = vadd.xlane.f32.xlu0 %v1265
      %v1267 = vpop.xlane.xlu0 %1266
      %v1268 = vadd.f32 %v1236, %v1246
      %v1269 = vadd.f32 %v1237, %v1249
      %v1270 = vadd.f32 %v1238, %v1252
      %v1271 = vadd.f32 %v1239, %v1255
      %v1272 = vadd.f32 %v1240, %v1258
      %v1273 = vadd.f32 %v1241, %v1261
      %v1274 = vadd.f32 %v1242, %v1264
      %v1275 = vadd.f32 %v1243, %v1267
      %vm1276 = vcmask 7168
      %1277 = vst.msk [vmem:[#allocation4] sm:$0xff] %vm1276, %v1268
      %1278 = vst.msk [vmem:[#allocation4 + $0x8] sm:$0xff] %vm1276, %v1269
      %1279 = vst.msk [vmem:[#allocation4 + $0x10] sm:$0xff] %vm1276, %v1270
      %1280 = vst.msk [vmem:[#allocation4 + $0x18] sm:$0xff] %vm1276, %v1271
      %1281 = vst.msk [vmem:[#allocation4 + $0x20] sm:$0xff] %vm1276, %v1272
      %1282 = vst.msk [vmem:[#allocation4 + $0x28] sm:$0xff] %vm1276, %v1273
      %1283 = vst.msk [vmem:[#allocation4 + $0x30] sm:$0xff] %vm1276, %v1274
      %1284 = vst.msk [vmem:[#allocation4 + $0x38] sm:$0xff] %vm1276, %v1275
      %v1285 = vld [vmem:[#allocation5] sm:$0xff]
      %v1286 = vld [vmem:[#allocation5 + $0x8] sm:$0xff]
      %v1287 = vld [vmem:[#allocation5 + $0x10] sm:$0xff]
      %v1288 = vld [vmem:[#allocation5 + $0x18] sm:$0xff]
      %v1289 = vld [vmem:[#allocation5 + $0x20] sm:$0xff]
      %v1290 = vld [vmem:[#allocation5 + $0x28] sm:$0xff]
      %v1291 = vld [vmem:[#allocation5 + $0x30] sm:$0xff]
      %v1292 = vld [vmem:[#allocation5 + $0x38] sm:$0xff]
      %1294 = vset.pattern.permute.xlu0 0
      %1295 = vperm.xlu0 %1294, %v1149
      %v1296 = vpop.permute.xlu0 %1295
      %1299 = vset.pattern.permute.xlu0 0
      %1300 = vperm.xlu0 %1299, %v1151
      %v1301 = vpop.permute.xlu0 %1300
      %1304 = vset.pattern.permute.xlu0 0
      %1305 = vperm.xlu0 %1304, %v1153
      %v1306 = vpop.permute.xlu0 %1305
      %1309 = vset.pattern.permute.xlu0 0
      %1310 = vperm.xlu0 %1309, %v1155
      %v1311 = vpop.permute.xlu0 %1310
      %1314 = vset.pattern.permute.xlu0 0
      %1315 = vperm.xlu0 %1314, %v1157
      %v1316 = vpop.permute.xlu0 %1315
      %1319 = vset.pattern.permute.xlu0 0
      %1320 = vperm.xlu0 %1319, %v1159
      %v1321 = vpop.permute.xlu0 %1320
      %1324 = vset.pattern.permute.xlu0 0
      %1325 = vperm.xlu0 %1324, %v1161
      %v1326 = vpop.permute.xlu0 %1325
      %1329 = vset.pattern.permute.xlu0 0
      %1330 = vperm.xlu0 %1329, %v1163
      %v1331 = vpop.permute.xlu0 %1330
      %v1333 = vmul.f32 %v1296, %v1285
      %v1334 = vmul.f32 %v1301, %v1286
      %v1335 = vmul.f32 %v1306, %v1287
      %v1336 = vmul.f32 %v1311, %v1288
      %v1337 = vmul.f32 %v1316, %v1289
      %v1338 = vmul.f32 %v1321, %v1290
      %v1339 = vmul.f32 %v1326, %v1291
      %v1340 = vmul.f32 %v1331, %v1292
      %v1342 = vsel %vm1107, %v1213, 0
      %v1345 = vsel %vm1107, %v1215, 0
      %v1348 = vsel %vm1107, %v1217, 0
      %v1351 = vsel %vm1107, %v1219, 0
      %v1354 = vsel %vm1107, %v1221, 0
      %v1357 = vsel %vm1107, %v1223, 0
      %v1360 = vsel %vm1107, %v1225, 0
      %v1363 = vsel %vm1107, %v1227, 0
      %1365 = vmatpush.msra.mxu0 0.0
      %1366 = vmatpush.msra.mxu0 0.0
      %1367 = vmatpush.msra.mxu0 0.0
      %1368 = vmatpush.msra.mxu0 0.0
      %1369 = vmatpush.msra.mxu0 0.0
      %1370 = vmatpush.msra.mxu0 0.0
      %1371 = vmatpush.msra.mxu0 0.0
      %1372 = vmatpush.msra.mxu0 0.0
      %1373 = vmatpush.msra.mxu0 %v999
      %1374 = vmatpush.msra.mxu0 %v996
      %1375 = vmatpush.msra.mxu0 %v993
      %1376 = vmatpush.msra.mxu0 %v990
      %1377 = vmatpush.msra.mxu0 %v987
      %1378 = vmatpush.msra.mxu0 %v984
      %1379 = vmatpush.msra.mxu0 %v981
      %1380 = vmatpush.msra.mxu0 %v978
      %1381 = vmatmul.f32.gmra.mxu0 %v1342
      %v1382 = vpop.f32.mrf.mxu0
      %v1383 = vadd.f32 0.0, %v1382
      %1384 = vmatmul.f32.gmra.mxu0 %v1345
      %v1385 = vpop.f32.mrf.mxu0
      %v1386 = vadd.f32 0.0, %v1385
      %1387 = vmatmul.f32.gmra.mxu0 %v1348
      %v1388 = vpop.f32.mrf.mxu0
      %v1389 = vadd.f32 0.0, %v1388
      %1390 = vmatmul.f32.gmra.mxu0 %v1351
      %v1391 = vpop.f32.mrf.mxu0
      %v1392 = vadd.f32 0.0, %v1391
      %1393 = vmatmul.f32.gmra.mxu0 %v1354
      %v1394 = vpop.f32.mrf.mxu0
      %v1395 = vadd.f32 0.0, %v1394
      %1396 = vmatmul.f32.gmra.mxu0 %v1357
      %v1397 = vpop.f32.mrf.mxu0
      %v1398 = vadd.f32 0.0, %v1397
      %1399 = vmatmul.f32.gmra.mxu0 %v1360
      %v1400 = vpop.f32.mrf.mxu0
      %v1401 = vadd.f32 0.0, %v1400
      %1402 = vmatmul.f32.gmra.mxu0 %v1363
      %v1403 = vpop.f32.mrf.mxu0
      %v1404 = vadd.f32 0.0, %v1403
      %1405 = vdwg.mxu0
      %v1406 = vadd.f32 %v1333, %v1383
      %v1407 = vadd.f32 %v1334, %v1386
      %v1408 = vadd.f32 %v1335, %v1389
      %v1409 = vadd.f32 %v1336, %v1392
      %v1410 = vadd.f32 %v1337, %v1395
      %v1411 = vadd.f32 %v1338, %v1398
      %v1412 = vadd.f32 %v1339, %v1401
      %v1413 = vadd.f32 %v1340, %v1404
      %1414 = vst.msk [vmem:[#allocation5] sm:$0xff] %vm1009, %v1406
      %1415 = vst.msk [vmem:[#allocation5 + $0x8] sm:$0xff] %vm1009, %v1407
      %1416 = vst.msk [vmem:[#allocation5 + $0x10] sm:$0xff] %vm1009, %v1408
      %1417 = vst.msk [vmem:[#allocation5 + $0x18] sm:$0xff] %vm1009, %v1409
      %1418 = vst.msk [vmem:[#allocation5 + $0x20] sm:$0xff] %vm1009, %v1410
      %1419 = vst.msk [vmem:[#allocation5 + $0x28] sm:$0xff] %vm1009, %v1411
      %1420 = vst.msk [vmem:[#allocation5 + $0x30] sm:$0xff] %vm1009, %v1412
      %1421 = vst.msk [vmem:[#allocation5 + $0x38] sm:$0xff] %vm1009, %v1413
      %1422 = vst.msk [vmem:[#allocation3] sm:$0xff] %vm1276, %v1132
      %1423 = vst.msk [vmem:[#allocation3 + $0x8] sm:$0xff] %vm1276, %v1133
      %1424 = vst.msk [vmem:[#allocation3 + $0x10] sm:$0xff] %vm1276, %v1134
      %1425 = vst.msk [vmem:[#allocation3 + $0x18] sm:$0xff] %vm1276, %v1135
      %1426 = vst.msk [vmem:[#allocation3 + $0x20] sm:$0xff] %vm1276, %v1136
      %1427 = vst.msk [vmem:[#allocation3 + $0x28] sm:$0xff] %vm1276, %v1137
      %1428 = vst.msk [vmem:[#allocation3 + $0x30] sm:$0xff] %vm1276, %v1138
      %1429 = vst.msk [vmem:[#allocation3 + $0x38] sm:$0xff] %vm1276, %v1139
      %s1430 = scalar_lea.vmem %s3, 8
      %v1431 = vld [vmem:[%s1430] sm:$0xff]
      %1432 = vmatpush.msra.mxu0 0.0
      %1433 = vmatpush.msra.mxu0 0.0
      %1434 = vmatpush.msra.mxu0 0.0
      %1435 = vmatpush.msra.mxu0 0.0
      %1436 = vmatpush.msra.mxu0 0.0
      %1437 = vmatpush.msra.mxu0 0.0
      %1438 = vmatpush.msra.mxu0 0.0
      %1439 = vmatpush.msra.mxu0 0.0
      %1440 = vmatpush.msra.mxu0 0.0
      %1441 = vmatpush.msra.mxu0 0.0
      %1442 = vmatpush.msra.mxu0 0.0
      %1443 = vmatpush.msra.mxu0 0.0
      %1444 = vmatpush.msra.mxu0 0.0
      %1445 = vmatpush.msra.mxu0 0.0
      %1446 = vmatpush.msra.mxu0 0.0
      %1447 = vmatpush.msra.mxu0 %v1431
      %1448 = vmatmul.f32.gmra.mxu0 %v895
      %v1449 = vpop.f32.mrf.mxu0
      %v1450 = vadd.f32 0.0, %v1449
      %1451 = vmatmul.f32.gmra.mxu0 %v898
      %v1452 = vpop.f32.mrf.mxu0
      %v1453 = vadd.f32 0.0, %v1452
      %1454 = vmatmul.f32.gmra.mxu0 %v901
      %v1455 = vpop.f32.mrf.mxu0
      %v1456 = vadd.f32 0.0, %v1455
      %1457 = vmatmul.f32.gmra.mxu0 %v904
      %v1458 = vpop.f32.mrf.mxu0
      %v1459 = vadd.f32 0.0, %v1458
      %1460 = vmatmul.f32.gmra.mxu0 %v907
      %v1461 = vpop.f32.mrf.mxu0
      %v1462 = vadd.f32 0.0, %v1461
      %1463 = vmatmul.f32.gmra.mxu0 %v910
      %v1464 = vpop.f32.mrf.mxu0
      %v1465 = vadd.f32 0.0, %v1464
      %1466 = vmatmul.f32.gmra.mxu0 %v913
      %v1467 = vpop.f32.mrf.mxu0
      %v1468 = vadd.f32 0.0, %v1467
      %1469 = vmatmul.f32.gmra.mxu0 %v916
      %v1470 = vpop.f32.mrf.mxu0
      %v1471 = vadd.f32 0.0, %v1470
      %1472 = vdwg.mxu0
      %s1473 = scalar_lea.vmem %s4, 8
      %v1474 = vld [vmem:[%s1473] sm:$0xff]
      %1475 = vmatpush.msra.mxu0 0.0
      %1476 = vmatpush.msra.mxu0 0.0
      %1477 = vmatpush.msra.mxu0 0.0
      %1478 = vmatpush.msra.mxu0 0.0
      %1479 = vmatpush.msra.mxu0 0.0
      %1480 = vmatpush.msra.mxu0 0.0
      %1481 = vmatpush.msra.mxu0 0.0
      %1482 = vmatpush.msra.mxu0 0.0
      %1483 = vmatpush.msra.mxu0 0.0
      %1484 = vmatpush.msra.mxu0 0.0
      %1485 = vmatpush.msra.mxu0 0.0
      %1486 = vmatpush.msra.mxu0 0.0
      %1487 = vmatpush.msra.mxu0 0.0
      %1488 = vmatpush.msra.mxu0 0.0
      %1489 = vmatpush.msra.mxu0 0.0
      %1490 = vmatpush.msra.mxu0 %v1474
      %1491 = vmatmul.f32.gmra.mxu0 %v895
      %v1492 = vpop.f32.mrf.mxu0
      %v1493 = vadd.f32 0.0, %v1492
      %1494 = vmatmul.f32.gmra.mxu0 %v898
      %v1495 = vpop.f32.mrf.mxu0
      %v1496 = vadd.f32 0.0, %v1495
      %1497 = vmatmul.f32.gmra.mxu0 %v901
      %v1498 = vpop.f32.mrf.mxu0
      %v1499 = vadd.f32 0.0, %v1498
      %1500 = vmatmul.f32.gmra.mxu0 %v904
      %v1501 = vpop.f32.mrf.mxu0
      %v1502 = vadd.f32 0.0, %v1501
      %1503 = vmatmul.f32.gmra.mxu0 %v907
      %v1504 = vpop.f32.mrf.mxu0
      %v1505 = vadd.f32 0.0, %v1504
      %1506 = vmatmul.f32.gmra.mxu0 %v910
      %v1507 = vpop.f32.mrf.mxu0
      %v1508 = vadd.f32 0.0, %v1507
      %1509 = vmatmul.f32.gmra.mxu0 %v913
      %v1510 = vpop.f32.mrf.mxu0
      %v1511 = vadd.f32 0.0, %v1510
      %1512 = vmatmul.f32.gmra.mxu0 %v916
      %v1513 = vpop.f32.mrf.mxu0
      %v1514 = vadd.f32 0.0, %v1513
      %1515 = vdwg.mxu0
      %s1516 = scalar_lea.vmem [#allocation2], 64
      %v1517 = vld [vmem:[%s1516] sm:$0xff]
      %v1518 = vld [vmem:[%s1516 + $0x8] sm:$0xff]
      %v1519 = vld [vmem:[%s1516 + $0x10] sm:$0xff]
      %v1520 = vld [vmem:[%s1516 + $0x18] sm:$0xff]
      %v1521 = vld [vmem:[%s1516 + $0x20] sm:$0xff]
      %v1522 = vld [vmem:[%s1516 + $0x28] sm:$0xff]
      %v1523 = vld [vmem:[%s1516 + $0x30] sm:$0xff]
      %v1524 = vld [vmem:[%s1516 + $0x38] sm:$0xff]
      %v1526 = vsel %vm1009, %v1517, 0
      %v1529 = vsel %vm1009, %v1518, 0
      %v1532 = vsel %vm1009, %v1519, 0
      %v1535 = vsel %vm1009, %v1520, 0
      %v1538 = vsel %vm1009, %v1521, 0
      %v1541 = vsel %vm1009, %v1522, 0
      %v1544 = vsel %vm1009, %v1523, 0
      %v1547 = vsel %vm1009, %v1524, 0
      %v1550 = vsel %vm1009, %v1450, 0
      %v1553 = vsel %vm1009, %v1453, 0
      %v1556 = vsel %vm1009, %v1456, 0
      %v1559 = vsel %vm1009, %v1459, 0
      %v1562 = vsel %vm1009, %v1462, 0
      %v1565 = vsel %vm1009, %v1465, 0
      %v1568 = vsel %vm1009, %v1468, 0
      %v1571 = vsel %vm1009, %v1471, 0
      %1573 = vmatpush.xpose.msra.mxu0 0.0
      %1574 = vmatpush.xpose.msra.mxu0 0.0
      %1575 = vmatpush.xpose.msra.mxu0 0.0
      %1576 = vmatpush.xpose.msra.mxu0 0.0
      %1577 = vmatpush.xpose.msra.mxu0 0.0
      %1578 = vmatpush.xpose.msra.mxu0 0.0
      %1579 = vmatpush.xpose.msra.mxu0 0.0
      %1580 = vmatpush.xpose.msra.mxu0 0.0
      %1581 = vmatpush.xpose.msra.mxu0 %v1571
      %1582 = vmatpush.xpose.msra.mxu0 %v1568
      %1583 = vmatpush.xpose.msra.mxu0 %v1565
      %1584 = vmatpush.xpose.msra.mxu0 %v1562
      %1585 = vmatpush.xpose.msra.mxu0 %v1559
      %1586 = vmatpush.xpose.msra.mxu0 %v1556
      %1587 = vmatpush.xpose.msra.mxu0 %v1553
      %1588 = vmatpush.xpose.msra.mxu0 %v1550
      %1589 = vmatmul.f32.gmra.mxu0 %v1526
      %v1590 = vpop.f32.mrf.mxu0
      %v1591 = vadd.f32 0.0, %v1590
      %1592 = vmatmul.f32.gmra.mxu0 %v1529
      %v1593 = vpop.f32.mrf.mxu0
      %v1594 = vadd.f32 0.0, %v1593
      %1595 = vmatmul.f32.gmra.mxu0 %v1532
      %v1596 = vpop.f32.mrf.mxu0
      %v1597 = vadd.f32 0.0, %v1596
      %1598 = vmatmul.f32.gmra.mxu0 %v1535
      %v1599 = vpop.f32.mrf.mxu0
      %v1600 = vadd.f32 0.0, %v1599
      %1601 = vmatmul.f32.gmra.mxu0 %v1538
      %v1602 = vpop.f32.mrf.mxu0
      %v1603 = vadd.f32 0.0, %v1602
      %1604 = vmatmul.f32.gmra.mxu0 %v1541
      %v1605 = vpop.f32.mrf.mxu0
      %v1606 = vadd.f32 0.0, %v1605
      %1607 = vmatmul.f32.gmra.mxu0 %v1544
      %v1608 = vpop.f32.mrf.mxu0
      %v1609 = vadd.f32 0.0, %v1608
      %1610 = vmatmul.f32.gmra.mxu0 %v1547
      %v1611 = vpop.f32.mrf.mxu0
      %v1612 = vadd.f32 0.0, %v1611
      %1613 = vdwg.mxu0
      %s1614 = scalar_lea.vmem [#allocation3], 64
      %v1615 = vld [vmem:[%s1614] sm:$0xff]
      %v1616 = vld [vmem:[%s1614 + $0x8] sm:$0xff]
      %v1617 = vld [vmem:[%s1614 + $0x10] sm:$0xff]
      %v1618 = vld [vmem:[%s1614 + $0x18] sm:$0xff]
      %v1619 = vld [vmem:[%s1614 + $0x20] sm:$0xff]
      %v1620 = vld [vmem:[%s1614 + $0x28] sm:$0xff]
      %v1621 = vld [vmem:[%s1614 + $0x30] sm:$0xff]
      %v1622 = vld [vmem:[%s1614 + $0x38] sm:$0xff]
      %v1623 = vsel %vm1107, %v1591, -inf
      %1624 = vmax.xlane.f32.xlu0 %v1623
      %v1625 = vpop.xlane.xlu0 %1624
      %v1626 = vsel %vm1107, %v1594, -inf
      %1627 = vmax.xlane.f32.xlu0 %v1626
      %v1628 = vpop.xlane.xlu0 %1627
      %v1629 = vsel %vm1107, %v1597, -inf
      %1630 = vmax.xlane.f32.xlu0 %v1629
      %v1631 = vpop.xlane.xlu0 %1630
      %v1632 = vsel %vm1107, %v1600, -inf
      %1633 = vmax.xlane.f32.xlu0 %v1632
      %v1634 = vpop.xlane.xlu0 %1633
      %v1635 = vsel %vm1107, %v1603, -inf
      %1636 = vmax.xlane.f32.xlu0 %v1635
      %v1637 = vpop.xlane.xlu0 %1636
      %v1638 = vsel %vm1107, %v1606, -inf
      %1639 = vmax.xlane.f32.xlu0 %v1638
      %v1640 = vpop.xlane.xlu0 %1639
      %v1641 = vsel %vm1107, %v1609, -inf
      %1642 = vmax.xlane.f32.xlu0 %v1641
      %v1643 = vpop.xlane.xlu0 %1642
      %v1644 = vsel %vm1107, %v1612, -inf
      %1645 = vmax.xlane.f32.xlu0 %v1644
      %v1646 = vpop.xlane.xlu0 %1645
      %v1647 = vmax.f32 %v1615, %v1625
      %v1648 = vmax.f32 %v1616, %v1628
      %v1649 = vmax.f32 %v1617, %v1631
      %v1650 = vmax.f32 %v1618, %v1634
      %v1651 = vmax.f32 %v1619, %v1637
      %v1652 = vmax.f32 %v1620, %v1640
      %v1653 = vmax.f32 %v1621, %v1643
      %v1654 = vmax.f32 %v1622, %v1646
      %v1655 = vsub.f32 %v1615, %v1647
      %v1656 = vsub.f32 %v1616, %v1648
      %v1657 = vsub.f32 %v1617, %v1649
      %v1658 = vsub.f32 %v1618, %v1650
      %v1659 = vsub.f32 %v1619, %v1651
      %v1660 = vsub.f32 %v1620, %v1652
      %v1661 = vsub.f32 %v1621, %v1653
      %v1662 = vsub.f32 %v1622, %v1654
      %v1663 = vmul.f32 %v1655, 1.442695
      %v1664 = vpow.pop %v1663
      %v1665 = vmul.f32 %v1656, 1.442695
      %v1666 = vpow.pop %v1665
      %v1667 = vmul.f32 %v1657, 1.442695
      %v1668 = vpow.pop %v1667
      %v1669 = vmul.f32 %v1658, 1.442695
      %v1670 = vpow.pop %v1669
      %v1671 = vmul.f32 %v1659, 1.442695
      %v1672 = vpow.pop %v1671
      %v1673 = vmul.f32 %v1660, 1.442695
      %v1674 = vpow.pop %v1673
      %v1675 = vmul.f32 %v1661, 1.442695
      %v1676 = vpow.pop %v1675
      %v1677 = vmul.f32 %v1662, 1.442695
      %v1678 = vpow.pop %v1677
      %1680 = vset.pattern.permute.xlu0 0
      %1681 = vperm.xlu0 %1680, %v1647
      %v1682 = vpop.permute.xlu0 %1681
      %1685 = vset.pattern.permute.xlu0 0
      %1686 = vperm.xlu0 %1685, %v1648
      %v1687 = vpop.permute.xlu0 %1686
      %1690 = vset.pattern.permute.xlu0 0
      %1691 = vperm.xlu0 %1690, %v1649
      %v1692 = vpop.permute.xlu0 %1691
      %1695 = vset.pattern.permute.xlu0 0
      %1696 = vperm.xlu0 %1695, %v1650
      %v1697 = vpop.permute.xlu0 %1696
      %1700 = vset.pattern.permute.xlu0 0
      %1701 = vperm.xlu0 %1700, %v1651
      %v1702 = vpop.permute.xlu0 %1701
      %1705 = vset.pattern.permute.xlu0 0
      %1706 = vperm.xlu0 %1705, %v1652
      %v1707 = vpop.permute.xlu0 %1706
      %1710 = vset.pattern.permute.xlu0 0
      %1711 = vperm.xlu0 %1710, %v1653
      %v1712 = vpop.permute.xlu0 %1711
      %1715 = vset.pattern.permute.xlu0 0
      %1716 = vperm.xlu0 %1715, %v1654
      %v1717 = vpop.permute.xlu0 %1716
      %v1719 = vsub.f32 %v1591, %v1682
      %v1720 = vsub.f32 %v1594, %v1687
      %v1721 = vsub.f32 %v1597, %v1692
      %v1722 = vsub.f32 %v1600, %v1697
      %v1723 = vsub.f32 %v1603, %v1702
      %v1724 = vsub.f32 %v1606, %v1707
      %v1725 = vsub.f32 %v1609, %v1712
      %v1726 = vsub.f32 %v1612, %v1717
      %v1727 = vmul.f32 %v1719, 1.442695
      %v1728 = vpow.pop %v1727
      %v1729 = vmul.f32 %v1720, 1.442695
      %v1730 = vpow.pop %v1729
      %v1731 = vmul.f32 %v1721, 1.442695
      %v1732 = vpow.pop %v1731
      %v1733 = vmul.f32 %v1722, 1.442695
      %v1734 = vpow.pop %v1733
      %v1735 = vmul.f32 %v1723, 1.442695
      %v1736 = vpow.pop %v1735
      %v1737 = vmul.f32 %v1724, 1.442695
      %v1738 = vpow.pop %v1737
      %v1739 = vmul.f32 %v1725, 1.442695
      %v1740 = vpow.pop %v1739
      %v1741 = vmul.f32 %v1726, 1.442695
      %v1742 = vpow.pop %v1741
      %s1743 = scalar_lea.vmem [#allocation4], 64
      %v1744 = vld [vmem:[%s1743] sm:$0xff]
      %v1745 = vld [vmem:[%s1743 + $0x8] sm:$0xff]
      %v1746 = vld [vmem:[%s1743 + $0x10] sm:$0xff]
      %v1747 = vld [vmem:[%s1743 + $0x18] sm:$0xff]
      %v1748 = vld [vmem:[%s1743 + $0x20] sm:$0xff]
      %v1749 = vld [vmem:[%s1743 + $0x28] sm:$0xff]
      %v1750 = vld [vmem:[%s1743 + $0x30] sm:$0xff]
      %v1751 = vld [vmem:[%s1743 + $0x38] sm:$0xff]
      %v1752 = vmul.f32 %v1664, %v1744
      %v1753 = vmul.f32 %v1666, %v1745
      %v1754 = vmul.f32 %v1668, %v1746
      %v1755 = vmul.f32 %v1670, %v1747
      %v1756 = vmul.f32 %v1672, %v1748
      %v1757 = vmul.f32 %v1674, %v1749
      %v1758 = vmul.f32 %v1676, %v1750
      %v1759 = vmul.f32 %v1678, %v1751
      %v1760 = vsel %vm1107, %v1728, 0.0
      %1761 = vadd.xlane.f32.xlu0 %v1760
      %v1762 = vpop.xlane.xlu0 %1761
      %v1763 = vsel %vm1107, %v1730, 0.0
      %1764 = vadd.xlane.f32.xlu0 %v1763
      %v1765 = vpop.xlane.xlu0 %1764
      %v1766 = vsel %vm1107, %v1732, 0.0
      %1767 = vadd.xlane.f32.xlu0 %v1766
      %v1768 = vpop.xlane.xlu0 %1767
      %v1769 = vsel %vm1107, %v1734, 0.0
      %1770 = vadd.xlane.f32.xlu0 %v1769
      %v1771 = vpop.xlane.xlu0 %1770
      %v1772 = vsel %vm1107, %v1736, 0.0
      %1773 = vadd.xlane.f32.xlu0 %v1772
      %v1774 = vpop.xlane.xlu0 %1773
      %v1775 = vsel %vm1107, %v1738, 0.0
      %1776 = vadd.xlane.f32.xlu0 %v1775
      %v1777 = vpop.xlane.xlu0 %1776
      %v1778 = vsel %vm1107, %v1740, 0.0
      %1779 = vadd.xlane.f32.xlu0 %v1778
      %v1780 = vpop.xlane.xlu0 %1779
      %v1781 = vsel %vm1107, %v1742, 0.0
      %1782 = vadd.xlane.f32.xlu0 %v1781
      %v1783 = vpop.xlane.xlu0 %1782
      %v1784 = vadd.f32 %v1752, %v1762
      %v1785 = vadd.f32 %v1753, %v1765
      %v1786 = vadd.f32 %v1754, %v1768
      %v1787 = vadd.f32 %v1755, %v1771
      %v1788 = vadd.f32 %v1756, %v1774
      %v1789 = vadd.f32 %v1757, %v1777
      %v1790 = vadd.f32 %v1758, %v1780
      %v1791 = vadd.f32 %v1759, %v1783
      %1792 = vst.msk [vmem:[%s1743] sm:$0xff] %vm1276, %v1784
      %1793 = vst.msk [vmem:[%s1743 + $0x8] sm:$0xff] %vm1276, %v1785
      %1794 = vst.msk [vmem:[%s1743 + $0x10] sm:$0xff] %vm1276, %v1786
      %1795 = vst.msk [vmem:[%s1743 + $0x18] sm:$0xff] %vm1276, %v1787
      %1796 = vst.msk [vmem:[%s1743 + $0x20] sm:$0xff] %vm1276, %v1788
      %1797 = vst.msk [vmem:[%s1743 + $0x28] sm:$0xff] %vm1276, %v1789
      %1798 = vst.msk [vmem:[%s1743 + $0x30] sm:$0xff] %vm1276, %v1790
      %1799 = vst.msk [vmem:[%s1743 + $0x38] sm:$0xff] %vm1276, %v1791
      %s1800 = scalar_lea.vmem [#allocation5], 64
      %v1801 = vld [vmem:[%s1800] sm:$0xff]
      %v1802 = vld [vmem:[%s1800 + $0x8] sm:$0xff]
      %v1803 = vld [vmem:[%s1800 + $0x10] sm:$0xff]
      %v1804 = vld [vmem:[%s1800 + $0x18] sm:$0xff]
      %v1805 = vld [vmem:[%s1800 + $0x20] sm:$0xff]
      %v1806 = vld [vmem:[%s1800 + $0x28] sm:$0xff]
      %v1807 = vld [vmem:[%s1800 + $0x30] sm:$0xff]
      %v1808 = vld [vmem:[%s1800 + $0x38] sm:$0xff]
      %1810 = vset.pattern.permute.xlu0 0
      %1811 = vperm.xlu0 %1810, %v1664
      %v1812 = vpop.permute.xlu0 %1811
      %1815 = vset.pattern.permute.xlu0 0
      %1816 = vperm.xlu0 %1815, %v1666
      %v1817 = vpop.permute.xlu0 %1816
      %1820 = vset.pattern.permute.xlu0 0
      %1821 = vperm.xlu0 %1820, %v1668
      %v1822 = vpop.permute.xlu0 %1821
      %1825 = vset.pattern.permute.xlu0 0
      %1826 = vperm.xlu0 %1825, %v1670
      %v1827 = vpop.permute.xlu0 %1826
      %1830 = vset.pattern.permute.xlu0 0
      %1831 = vperm.xlu0 %1830, %v1672
      %v1832 = vpop.permute.xlu0 %1831
      %1835 = vset.pattern.permute.xlu0 0
      %1836 = vperm.xlu0 %1835, %v1674
      %v1837 = vpop.permute.xlu0 %1836
      %1840 = vset.pattern.permute.xlu0 0
      %1841 = vperm.xlu0 %1840, %v1676
      %v1842 = vpop.permute.xlu0 %1841
      %1845 = vset.pattern.permute.xlu0 0
      %1846 = vperm.xlu0 %1845, %v1678
      %v1847 = vpop.permute.xlu0 %1846
      %v1849 = vmul.f32 %v1812, %v1801
      %v1850 = vmul.f32 %v1817, %v1802
      %v1851 = vmul.f32 %v1822, %v1803
      %v1852 = vmul.f32 %v1827, %v1804
      %v1853 = vmul.f32 %v1832, %v1805
      %v1854 = vmul.f32 %v1837, %v1806
      %v1855 = vmul.f32 %v1842, %v1807
      %v1856 = vmul.f32 %v1847, %v1808
      %v1858 = vsel %vm1107, %v1728, 0
      %v1861 = vsel %vm1107, %v1730, 0
      %v1864 = vsel %vm1107, %v1732, 0
      %v1867 = vsel %vm1107, %v1734, 0
      %v1870 = vsel %vm1107, %v1736, 0
      %v1873 = vsel %vm1107, %v1738, 0
      %v1876 = vsel %vm1107, %v1740, 0
      %v1879 = vsel %vm1107, %v1742, 0
      %1881 = vmatpush.msra.mxu0 0.0
      %1882 = vmatpush.msra.mxu0 0.0
      %1883 = vmatpush.msra.mxu0 0.0
      %1884 = vmatpush.msra.mxu0 0.0
      %1885 = vmatpush.msra.mxu0 0.0
      %1886 = vmatpush.msra.mxu0 0.0
      %1887 = vmatpush.msra.mxu0 0.0
      %1888 = vmatpush.msra.mxu0 0.0
      %1889 = vmatpush.msra.mxu0 %v1514
      %1890 = vmatpush.msra.mxu0 %v1511
      %1891 = vmatpush.msra.mxu0 %v1508
      %1892 = vmatpush.msra.mxu0 %v1505
      %1893 = vmatpush.msra.mxu0 %v1502
      %1894 = vmatpush.msra.mxu0 %v1499
      %1895 = vmatpush.msra.mxu0 %v1496
      %1896 = vmatpush.msra.mxu0 %v1493
      %1897 = vmatmul.f32.gmra.mxu0 %v1858
      %v1898 = vpop.f32.mrf.mxu0
      %v1899 = vadd.f32 0.0, %v1898
      %1900 = vmatmul.f32.gmra.mxu0 %v1861
      %v1901 = vpop.f32.mrf.mxu0
      %v1902 = vadd.f32 0.0, %v1901
      %1903 = vmatmul.f32.gmra.mxu0 %v1864
      %v1904 = vpop.f32.mrf.mxu0
      %v1905 = vadd.f32 0.0, %v1904
      %1906 = vmatmul.f32.gmra.mxu0 %v1867
      %v1907 = vpop.f32.mrf.mxu0
      %v1908 = vadd.f32 0.0, %v1907
      %1909 = vmatmul.f32.gmra.mxu0 %v1870
      %v1910 = vpop.f32.mrf.mxu0
      %v1911 = vadd.f32 0.0, %v1910
      %1912 = vmatmul.f32.gmra.mxu0 %v1873
      %v1913 = vpop.f32.mrf.mxu0
      %v1914 = vadd.f32 0.0, %v1913
      %1915 = vmatmul.f32.gmra.mxu0 %v1876
      %v1916 = vpop.f32.mrf.mxu0
      %v1917 = vadd.f32 0.0, %v1916
      %1918 = vmatmul.f32.gmra.mxu0 %v1879
      %v1919 = vpop.f32.mrf.mxu0
      %v1920 = vadd.f32 0.0, %v1919
      %1921 = vdwg.mxu0
      %v1922 = vadd.f32 %v1849, %v1899
      %v1923 = vadd.f32 %v1850, %v1902
      %v1924 = vadd.f32 %v1851, %v1905
      %v1925 = vadd.f32 %v1852, %v1908
      %v1926 = vadd.f32 %v1853, %v1911
      %v1927 = vadd.f32 %v1854, %v1914
      %v1928 = vadd.f32 %v1855, %v1917
      %v1929 = vadd.f32 %v1856, %v1920
      %1930 = vst.msk [vmem:[%s1800] sm:$0xff] %vm1009, %v1922
      %1931 = vst.msk [vmem:[%s1800 + $0x8] sm:$0xff] %vm1009, %v1923
      %1932 = vst.msk [vmem:[%s1800 + $0x10] sm:$0xff] %vm1009, %v1924
      %1933 = vst.msk [vmem:[%s1800 + $0x18] sm:$0xff] %vm1009, %v1925
      %1934 = vst.msk [vmem:[%s1800 + $0x20] sm:$0xff] %vm1009, %v1926
      %1935 = vst.msk [vmem:[%s1800 + $0x28] sm:$0xff] %vm1009, %v1927
      %1936 = vst.msk [vmem:[%s1800 + $0x30] sm:$0xff] %vm1009, %v1928
      %1937 = vst.msk [vmem:[%s1800 + $0x38] sm:$0xff] %vm1009, %v1929
      %1938 = vst.msk [vmem:[%s1614] sm:$0xff] %vm1276, %v1647
      %1939 = vst.msk [vmem:[%s1614 + $0x8] sm:$0xff] %vm1276, %v1648
      %1940 = vst.msk [vmem:[%s1614 + $0x10] sm:$0xff] %vm1276, %v1649
      %1941 = vst.msk [vmem:[%s1614 + $0x18] sm:$0xff] %vm1276, %v1650
      %1942 = vst.msk [vmem:[%s1614 + $0x20] sm:$0xff] %vm1276, %v1651
      %1943 = vst.msk [vmem:[%s1614 + $0x28] sm:$0xff] %vm1276, %v1652
      %1944 = vst.msk [vmem:[%s1614 + $0x30] sm:$0xff] %vm1276, %v1653
      %1945 = vst.msk [vmem:[%s1614 + $0x38] sm:$0xff] %vm1276, %v1654
      %p1946 = scmp.eq.s32.totalorder %s27, 3
      // Predicated region
      $region61: #{tpu_custom_call.1} parent=55 // pred_check
        %p1947 = pneg %p1946
      $region62: #{tpu_custom_call.1} parent=55 // pred_check_branch
        %1949 = sbr.rel (%p1947) target = $region64
      $region63: #{tpu_custom_call.1} parent=55 // pred_region
        %v1950 = vld [vmem:[%s7] sm:$0x1]
        %v1952 = vperm.slane %v1950, 0
        %v1954 = vld [vmem:[#allocation4] sm:$0xff]
        %v1955 = vld [vmem:[#allocation4 + $0x8] sm:$0xff]
        %v1956 = vld [vmem:[#allocation4 + $0x10] sm:$0xff]
        %v1957 = vld [vmem:[#allocation4 + $0x18] sm:$0xff]
        %v1958 = vld [vmem:[#allocation4 + $0x20] sm:$0xff]
        %v1959 = vld [vmem:[#allocation4 + $0x28] sm:$0xff]
        %v1960 = vld [vmem:[#allocation4 + $0x30] sm:$0xff]
        %v1961 = vld [vmem:[#allocation4 + $0x38] sm:$0xff]
        %v1962 = vrcp.pop %v1954
        %v1963 = vmul.f32 %v1954, %v1962
        %v1964 = vsub.f32 1.0, %v1963
        %v1965 = vmul.f32 %v1962, %v1964
        %v1966 = vadd.f32 %v1962, %v1965
        %vm1967 = vweird.f32 %v1954
        %vm1968 = vweird.f32 %v1962
        %vm1969 = vmor %vm1967, %vm1968
        %v1970 = vsel %vm1969, %v1962, %v1966
        %v1971 = vand.u32 2147483647, %v1954
        %vm1972 = vcmp.eq.f32.partialorder %v1971, 8.507059e+37
        %v1973 = vand.u32 %v1954, 2147483648
        %v1974 = vor.u32 1.1754944e-38, %v1973
        %v1975 = vsel %vm1972, %v1974, %v1970
        %v1976 = vrcp.pop %v1955
        %v1977 = vmul.f32 %v1955, %v1976
        %v1978 = vsub.f32 1.0, %v1977
        %v1979 = vmul.f32 %v1976, %v1978
        %v1980 = vadd.f32 %v1976, %v1979
        %vm1981 = vweird.f32 %v1955
        %vm1982 = vweird.f32 %v1976
        %vm1983 = vmor %vm1981, %vm1982
        %v1984 = vsel %vm1983, %v1976, %v1980
        %v1985 = vand.u32 2147483647, %v1955
        %vm1986 = vcmp.eq.f32.partialorder %v1985, 8.507059e+37
        %v1987 = vand.u32 %v1955, 2147483648
        %v1988 = vor.u32 1.1754944e-38, %v1987
        %v1989 = vsel %vm1986, %v1988, %v1984
        %v1990 = vrcp.pop %v1956
        %v1991 = vmul.f32 %v1956, %v1990
        %v1992 = vsub.f32 1.0, %v1991
        %v1993 = vmul.f32 %v1990, %v1992
        %v1994 = vadd.f32 %v1990, %v1993
        %vm1995 = vweird.f32 %v1956
        %vm1996 = vweird.f32 %v1990
        %vm1997 = vmor %vm1995, %vm1996
        %v1998 = vsel %vm1997, %v1990, %v1994
        %v1999 = vand.u32 2147483647, %v1956
        %vm2000 = vcmp.eq.f32.partialorder %v1999, 8.507059e+37
        %v2001 = vand.u32 %v1956, 2147483648
        %v2002 = vor.u32 1.1754944e-38, %v2001
        %v2003 = vsel %vm2000, %v2002, %v1998
        %v2004 = vrcp.pop %v1957
        %v2005 = vmul.f32 %v1957, %v2004
        %v2006 = vsub.f32 1.0, %v2005
        %v2007 = vmul.f32 %v2004, %v2006
        %v2008 = vadd.f32 %v2004, %v2007
        %vm2009 = vweird.f32 %v1957
        %vm2010 = vweird.f32 %v2004
        %vm2011 = vmor %vm2009, %vm2010
        %v2012 = vsel %vm2011, %v2004, %v2008
        %v2013 = vand.u32 2147483647, %v1957
        %vm2014 = vcmp.eq.f32.partialorder %v2013, 8.507059e+37
        %v2015 = vand.u32 %v1957, 2147483648
        %v2016 = vor.u32 1.1754944e-38, %v2015
        %v2017 = vsel %vm2014, %v2016, %v2012
        %v2018 = vrcp.pop %v1958
        %v2019 = vmul.f32 %v1958, %v2018
        %v2020 = vsub.f32 1.0, %v2019
        %v2021 = vmul.f32 %v2018, %v2020
        %v2022 = vadd.f32 %v2018, %v2021
        %vm2023 = vweird.f32 %v1958
        %vm2024 = vweird.f32 %v2018
        %vm2025 = vmor %vm2023, %vm2024
        %v2026 = vsel %vm2025, %v2018, %v2022
        %v2027 = vand.u32 2147483647, %v1958
        %vm2028 = vcmp.eq.f32.partialorder %v2027, 8.507059e+37
        %v2029 = vand.u32 %v1958, 2147483648
        %v2030 = vor.u32 1.1754944e-38, %v2029
        %v2031 = vsel %vm2028, %v2030, %v2026
        %v2032 = vrcp.pop %v1959
        %v2033 = vmul.f32 %v1959, %v2032
        %v2034 = vsub.f32 1.0, %v2033
        %v2035 = vmul.f32 %v2032, %v2034
        %v2036 = vadd.f32 %v2032, %v2035
        %vm2037 = vweird.f32 %v1959
        %vm2038 = vweird.f32 %v2032
        %vm2039 = vmor %vm2037, %vm2038
        %v2040 = vsel %vm2039, %v2032, %v2036
        %v2041 = vand.u32 2147483647, %v1959
        %vm2042 = vcmp.eq.f32.partialorder %v2041, 8.507059e+37
        %v2043 = vand.u32 %v1959, 2147483648
        %v2044 = vor.u32 1.1754944e-38, %v2043
        %v2045 = vsel %vm2042, %v2044, %v2040
        %v2046 = vrcp.pop %v1960
        %v2047 = vmul.f32 %v1960, %v2046
        %v2048 = vsub.f32 1.0, %v2047
        %v2049 = vmul.f32 %v2046, %v2048
        %v2050 = vadd.f32 %v2046, %v2049
        %vm2051 = vweird.f32 %v1960
        %vm2052 = vweird.f32 %v2046
        %vm2053 = vmor %vm2051, %vm2052
        %v2054 = vsel %vm2053, %v2046, %v2050
        %v2055 = vand.u32 2147483647, %v1960
        %vm2056 = vcmp.eq.f32.partialorder %v2055, 8.507059e+37
        %v2057 = vand.u32 %v1960, 2147483648
        %v2058 = vor.u32 1.1754944e-38, %v2057
        %v2059 = vsel %vm2056, %v2058, %v2054
        %v2060 = vrcp.pop %v1961
        %v2061 = vmul.f32 %v1961, %v2060
        %v2062 = vsub.f32 1.0, %v2061
        %v2063 = vmul.f32 %v2060, %v2062
        %v2064 = vadd.f32 %v2060, %v2063
        %vm2065 = vweird.f32 %v1961
        %vm2066 = vweird.f32 %v2060
        %vm2067 = vmor %vm2065, %vm2066
        %v2068 = vsel %vm2067, %v2060, %v2064
        %v2069 = vand.u32 2147483647, %v1961
        %vm2070 = vcmp.eq.f32.partialorder %v2069, 8.507059e+37
        %v2071 = vand.u32 %v1961, 2147483648
        %v2072 = vor.u32 1.1754944e-38, %v2071
        %v2073 = vsel %vm2070, %v2072, %v2068
        %v2074 = vld [vmem:[#allocation5] sm:$0xff]
        %v2075 = vld [vmem:[#allocation5 + $0x8] sm:$0xff]
        %v2076 = vld [vmem:[#allocation5 + $0x10] sm:$0xff]
        %v2077 = vld [vmem:[#allocation5 + $0x18] sm:$0xff]
        %v2078 = vld [vmem:[#allocation5 + $0x20] sm:$0xff]
        %v2079 = vld [vmem:[#allocation5 + $0x28] sm:$0xff]
        %v2080 = vld [vmem:[#allocation5 + $0x30] sm:$0xff]
        %v2081 = vld [vmem:[#allocation5 + $0x38] sm:$0xff]
        %2083 = vset.pattern.permute.xlu0 0
        %2084 = vperm.xlu0 %2083, %v1975
        %v2085 = vpop.permute.xlu0 %2084
        %2088 = vset.pattern.permute.xlu0 0
        %2089 = vperm.xlu0 %2088, %v1989
        %v2090 = vpop.permute.xlu0 %2089
        %2093 = vset.pattern.permute.xlu0 0
        %2094 = vperm.xlu0 %2093, %v2003
        %v2095 = vpop.permute.xlu0 %2094
        %2098 = vset.pattern.permute.xlu0 0
        %2099 = vperm.xlu0 %2098, %v2017
        %v2100 = vpop.permute.xlu0 %2099
        %2103 = vset.pattern.permute.xlu0 0
        %2104 = vperm.xlu0 %2103, %v2031
        %v2105 = vpop.permute.xlu0 %2104
        %2108 = vset.pattern.permute.xlu0 0
        %2109 = vperm.xlu0 %2108, %v2045
        %v2110 = vpop.permute.xlu0 %2109
        %2113 = vset.pattern.permute.xlu0 0
        %2114 = vperm.xlu0 %2113, %v2059
        %v2115 = vpop.permute.xlu0 %2114
        %2118 = vset.pattern.permute.xlu0 0
        %2119 = vperm.xlu0 %2118, %v2073
        %v2120 = vpop.permute.xlu0 %2119
        %v2122 = vmul.f32 %v2074, %v2085
        %v2123 = vmul.f32 %v2075, %v2090
        %v2124 = vmul.f32 %v2076, %v2095
        %v2125 = vmul.f32 %v2077, %v2100
        %v2126 = vmul.f32 %v2078, %v2105
        %v2127 = vmul.f32 %v2079, %v2110
        %v2128 = vmul.f32 %v2080, %v2115
        %v2129 = vmul.f32 %v2081, %v2120
        %v2130 = vld [vmem:[%s5] sm:$0xff]
        %v2131 = vld [vmem:[%s5 + $0x8] sm:$0xff]
        %v2133 = vsel %vm1009, %v2122, 0
        %v2136 = vsel %vm1009, %v2123, 0
        %v2139 = vsel %vm1009, %v2124, 0
        %v2142 = vsel %vm1009, %v2125, 0
        %v2145 = vsel %vm1009, %v2126, 0
        %v2148 = vsel %vm1009, %v2127, 0
        %v2151 = vsel %vm1009, %v2128, 0
        %v2154 = vsel %vm1009, %v2129, 0
        %2156 = vmatpush.msra.mxu0 0.0
        %2157 = vmatpush.msra.mxu0 0.0
        %2158 = vmatpush.msra.mxu0 0.0
        %2159 = vmatpush.msra.mxu0 0.0
        %2160 = vmatpush.msra.mxu0 0.0
        %2161 = vmatpush.msra.mxu0 0.0
        %2162 = vmatpush.msra.mxu0 0.0
        %2163 = vmatpush.msra.mxu0 0.0
        %2164 = vmatpush.msra.mxu0 0.0
        %2165 = vmatpush.msra.mxu0 0.0
        %2166 = vmatpush.msra.mxu0 0.0
        %2167 = vmatpush.msra.mxu0 0.0
        %2168 = vmatpush.msra.mxu0 0.0
        %2169 = vmatpush.msra.mxu0 0.0
        %2170 = vmatpush.msra.mxu0 %v2131
        %2171 = vmatpush.msra.mxu0 %v2130
        %2172 = vmatmul.f32.gmra.mxu0 %v2133
        %v2173 = vpop.f32.mrf.mxu0
        %v2174 = vadd.f32 0.0, %v2173
        %2175 = vmatmul.f32.gmra.mxu0 %v2136
        %v2176 = vpop.f32.mrf.mxu0
        %v2177 = vadd.f32 0.0, %v2176
        %2178 = vmatmul.f32.gmra.mxu0 %v2139
        %v2179 = vpop.f32.mrf.mxu0
        %v2180 = vadd.f32 0.0, %v2179
        %2181 = vmatmul.f32.gmra.mxu0 %v2142
        %v2182 = vpop.f32.mrf.mxu0
        %v2183 = vadd.f32 0.0, %v2182
        %2184 = vmatmul.f32.gmra.mxu0 %v2145
        %v2185 = vpop.f32.mrf.mxu0
        %v2186 = vadd.f32 0.0, %v2185
        %2187 = vmatmul.f32.gmra.mxu0 %v2148
        %v2188 = vpop.f32.mrf.mxu0
        %v2189 = vadd.f32 0.0, %v2188
        %2190 = vmatmul.f32.gmra.mxu0 %v2151
        %v2191 = vpop.f32.mrf.mxu0
        %v2192 = vadd.f32 0.0, %v2191
        %2193 = vmatmul.f32.gmra.mxu0 %v2154
        %v2194 = vpop.f32.mrf.mxu0
        %v2195 = vadd.f32 0.0, %v2194
        %2196 = vdwg.mxu0
        %v2197 = vadd.f32 %v1952, %v2174
        %v2198 = vadd.f32 %v1952, %v2177
        %v2199 = vadd.f32 %v1952, %v2180
        %v2200 = vadd.f32 %v1952, %v2183
        %v2201 = vadd.f32 %v1952, %v2186
        %v2202 = vadd.f32 %v1952, %v2189
        %v2203 = vadd.f32 %v1952, %v2192
        %v2204 = vadd.f32 %v1952, %v2195
        %v2205 = vld [vmem:[%s1743] sm:$0xff]
        %v2206 = vld [vmem:[%s1743 + $0x8] sm:$0xff]
        %v2207 = vld [vmem:[%s1743 + $0x10] sm:$0xff]
        %v2208 = vld [vmem:[%s1743 + $0x18] sm:$0xff]
        %v2209 = vld [vmem:[%s1743 + $0x20] sm:$0xff]
        %v2210 = vld [vmem:[%s1743 + $0x28] sm:$0xff]
        %v2211 = vld [vmem:[%s1743 + $0x30] sm:$0xff]
        %v2212 = vld [vmem:[%s1743 + $0x38] sm:$0xff]
        %v2213 = vrcp.pop %v2205
        %v2214 = vmul.f32 %v2205, %v2213
        %v2215 = vsub.f32 1.0, %v2214
        %v2216 = vmul.f32 %v2213, %v2215
        %v2217 = vadd.f32 %v2213, %v2216
        %vm2218 = vweird.f32 %v2205
        %vm2219 = vweird.f32 %v2213
        %vm2220 = vmor %vm2218, %vm2219
        %v2221 = vsel %vm2220, %v2213, %v2217
        %v2222 = vand.u32 2147483647, %v2205
        %vm2223 = vcmp.eq.f32.partialorder %v2222, 8.507059e+37
        %v2224 = vand.u32 %v2205, 2147483648
        %v2225 = vor.u32 1.1754944e-38, %v2224
        %v2226 = vsel %vm2223, %v2225, %v2221
        %v2227 = vrcp.pop %v2206
        %v2228 = vmul.f32 %v2206, %v2227
        %v2229 = vsub.f32 1.0, %v2228
        %v2230 = vmul.f32 %v2227, %v2229
        %v2231 = vadd.f32 %v2227, %v2230
        %vm2232 = vweird.f32 %v2206
        %vm2233 = vweird.f32 %v2227
        %vm2234 = vmor %vm2232, %vm2233
        %v2235 = vsel %vm2234, %v2227, %v2231
        %v2236 = vand.u32 2147483647, %v2206
        %vm2237 = vcmp.eq.f32.partialorder %v2236, 8.507059e+37
        %v2238 = vand.u32 %v2206, 2147483648
        %v2239 = vor.u32 1.1754944e-38, %v2238
        %v2240 = vsel %vm2237, %v2239, %v2235
        %v2241 = vrcp.pop %v2207
        %v2242 = vmul.f32 %v2207, %v2241
        %v2243 = vsub.f32 1.0, %v2242
        %v2244 = vmul.f32 %v2241, %v2243
        %v2245 = vadd.f32 %v2241, %v2244
        %vm2246 = vweird.f32 %v2207
        %vm2247 = vweird.f32 %v2241
        %vm2248 = vmor %vm2246, %vm2247
        %v2249 = vsel %vm2248, %v2241, %v2245
        %v2250 = vand.u32 2147483647, %v2207
        %vm2251 = vcmp.eq.f32.partialorder %v2250, 8.507059e+37
        %v2252 = vand.u32 %v2207, 2147483648
        %v2253 = vor.u32 1.1754944e-38, %v2252
        %v2254 = vsel %vm2251, %v2253, %v2249
        %v2255 = vrcp.pop %v2208
        %v2256 = vmul.f32 %v2208, %v2255
        %v2257 = vsub.f32 1.0, %v2256
        %v2258 = vmul.f32 %v2255, %v2257
        %v2259 = vadd.f32 %v2255, %v2258
        %vm2260 = vweird.f32 %v2208
        %vm2261 = vweird.f32 %v2255
        %vm2262 = vmor %vm2260, %vm2261
        %v2263 = vsel %vm2262, %v2255, %v2259
        %v2264 = vand.u32 2147483647, %v2208
        %vm2265 = vcmp.eq.f32.partialorder %v2264, 8.507059e+37
        %v2266 = vand.u32 %v2208, 2147483648
        %v2267 = vor.u32 1.1754944e-38, %v2266
        %v2268 = vsel %vm2265, %v2267, %v2263
        %v2269 = vrcp.pop %v2209
        %v2270 = vmul.f32 %v2209, %v2269
        %v2271 = vsub.f32 1.0, %v2270
        %v2272 = vmul.f32 %v2269, %v2271
        %v2273 = vadd.f32 %v2269, %v2272
        %vm2274 = vweird.f32 %v2209
        %vm2275 = vweird.f32 %v2269
        %vm2276 = vmor %vm2274, %vm2275
        %v2277 = vsel %vm2276, %v2269, %v2273
        %v2278 = vand.u32 2147483647, %v2209
        %vm2279 = vcmp.eq.f32.partialorder %v2278, 8.507059e+37
        %v2280 = vand.u32 %v2209, 2147483648
        %v2281 = vor.u32 1.1754944e-38, %v2280
        %v2282 = vsel %vm2279, %v2281, %v2277
        %v2283 = vrcp.pop %v2210
        %v2284 = vmul.f32 %v2210, %v2283
        %v2285 = vsub.f32 1.0, %v2284
        %v2286 = vmul.f32 %v2283, %v2285
        %v2287 = vadd.f32 %v2283, %v2286
        %vm2288 = vweird.f32 %v2210
        %vm2289 = vweird.f32 %v2283
        %vm2290 = vmor %vm2288, %vm2289
        %v2291 = vsel %vm2290, %v2283, %v2287
        %v2292 = vand.u32 2147483647, %v2210
        %vm2293 = vcmp.eq.f32.partialorder %v2292, 8.507059e+37
        %v2294 = vand.u32 %v2210, 2147483648
        %v2295 = vor.u32 1.1754944e-38, %v2294
        %v2296 = vsel %vm2293, %v2295, %v2291
        %v2297 = vrcp.pop %v2211
        %v2298 = vmul.f32 %v2211, %v2297
        %v2299 = vsub.f32 1.0, %v2298
        %v2300 = vmul.f32 %v2297, %v2299
        %v2301 = vadd.f32 %v2297, %v2300
        %vm2302 = vweird.f32 %v2211
        %vm2303 = vweird.f32 %v2297
        %vm2304 = vmor %vm2302, %vm2303
        %v2305 = vsel %vm2304, %v2297, %v2301
        %v2306 = vand.u32 2147483647, %v2211
        %vm2307 = vcmp.eq.f32.partialorder %v2306, 8.507059e+37
        %v2308 = vand.u32 %v2211, 2147483648
        %v2309 = vor.u32 1.1754944e-38, %v2308
        %v2310 = vsel %vm2307, %v2309, %v2305
        %v2311 = vrcp.pop %v2212
        %v2312 = vmul.f32 %v2212, %v2311
        %v2313 = vsub.f32 1.0, %v2312
        %v2314 = vmul.f32 %v2311, %v2313
        %v2315 = vadd.f32 %v2311, %v2314
        %vm2316 = vweird.f32 %v2212
        %vm2317 = vweird.f32 %v2311
        %vm2318 = vmor %vm2316, %vm2317
        %v2319 = vsel %vm2318, %v2311, %v2315
        %v2320 = vand.u32 2147483647, %v2212
        %vm2321 = vcmp.eq.f32.partialorder %v2320, 8.507059e+37
        %v2322 = vand.u32 %v2212, 2147483648
        %v2323 = vor.u32 1.1754944e-38, %v2322
        %v2324 = vsel %vm2321, %v2323, %v2319
        %v2325 = vld [vmem:[%s1800] sm:$0xff]
        %v2326 = vld [vmem:[%s1800 + $0x8] sm:$0xff]
        %v2327 = vld [vmem:[%s1800 + $0x10] sm:$0xff]
        %v2328 = vld [vmem:[%s1800 + $0x18] sm:$0xff]
        %v2329 = vld [vmem:[%s1800 + $0x20] sm:$0xff]
        %v2330 = vld [vmem:[%s1800 + $0x28] sm:$0xff]
        %v2331 = vld [vmem:[%s1800 + $0x30] sm:$0xff]
        %v2332 = vld [vmem:[%s1800 + $0x38] sm:$0xff]
        %2334 = vset.pattern.permute.xlu0 0
        %2335 = vperm.xlu0 %2334, %v2226
        %v2336 = vpop.permute.xlu0 %2335
        %2339 = vset.pattern.permute.xlu0 0
        %2340 = vperm.xlu0 %2339, %v2240
        %v2341 = vpop.permute.xlu0 %2340
        %2344 = vset.pattern.permute.xlu0 0
        %2345 = vperm.xlu0 %2344, %v2254
        %v2346 = vpop.permute.xlu0 %2345
        %2349 = vset.pattern.permute.xlu0 0
        %2350 = vperm.xlu0 %2349, %v2268
        %v2351 = vpop.permute.xlu0 %2350
        %2354 = vset.pattern.permute.xlu0 0
        %2355 = vperm.xlu0 %2354, %v2282
        %v2356 = vpop.permute.xlu0 %2355
        %2359 = vset.pattern.permute.xlu0 0
        %2360 = vperm.xlu0 %2359, %v2296
        %v2361 = vpop.permute.xlu0 %2360
        %2364 = vset.pattern.permute.xlu0 0
        %2365 = vperm.xlu0 %2364, %v2310
        %v2366 = vpop.permute.xlu0 %2365
        %2369 = vset.pattern.permute.xlu0 0
        %2370 = vperm.xlu0 %2369, %v2324
        %v2371 = vpop.permute.xlu0 %2370
        %v2373 = vmul.f32 %v2325, %v2336
        %v2374 = vmul.f32 %v2326, %v2341
        %v2375 = vmul.f32 %v2327, %v2346
        %v2376 = vmul.f32 %v2328, %v2351
        %v2377 = vmul.f32 %v2329, %v2356
        %v2378 = vmul.f32 %v2330, %v2361
        %v2379 = vmul.f32 %v2331, %v2366
        %v2380 = vmul.f32 %v2332, %v2371
        %s2381 = scalar_lea.vmem %s5, 16
        %v2382 = vld [vmem:[%s2381] sm:$0xff]
        %v2383 = vld [vmem:[%s2381 + $0x8] sm:$0xff]
        %v2385 = vsel %vm1009, %v2373, 0
        %v2388 = vsel %vm1009, %v2374, 0
        %v2391 = vsel %vm1009, %v2375, 0
        %v2394 = vsel %vm1009, %v2376, 0
        %v2397 = vsel %vm1009, %v2377, 0
        %v2400 = vsel %vm1009, %v2378, 0
        %v2403 = vsel %vm1009, %v2379, 0
        %v2406 = vsel %vm1009, %v2380, 0
        %2408 = vmatpush.msra.mxu0 0.0
        %2409 = vmatpush.msra.mxu0 0.0
        %2410 = vmatpush.msra.mxu0 0.0
        %2411 = vmatpush.msra.mxu0 0.0
        %2412 = vmatpush.msra.mxu0 0.0
        %2413 = vmatpush.msra.mxu0 0.0
        %2414 = vmatpush.msra.mxu0 0.0
        %2415 = vmatpush.msra.mxu0 0.0
        %2416 = vmatpush.msra.mxu0 0.0
        %2417 = vmatpush.msra.mxu0 0.0
        %2418 = vmatpush.msra.mxu0 0.0
        %2419 = vmatpush.msra.mxu0 0.0
        %2420 = vmatpush.msra.mxu0 0.0
        %2421 = vmatpush.msra.mxu0 0.0
        %2422 = vmatpush.msra.mxu0 %v2383
        %2423 = vmatpush.msra.mxu0 %v2382
        %2424 = vmatmul.f32.gmra.mxu0 %v2385
        %v2425 = vpop.f32.mrf.mxu0
        %v2426 = vadd.f32 0.0, %v2425
        %2427 = vmatmul.f32.gmra.mxu0 %v2388
        %v2428 = vpop.f32.mrf.mxu0
        %v2429 = vadd.f32 0.0, %v2428
        %2430 = vmatmul.f32.gmra.mxu0 %v2391
        %v2431 = vpop.f32.mrf.mxu0
        %v2432 = vadd.f32 0.0, %v2431
        %2433 = vmatmul.f32.gmra.mxu0 %v2394
        %v2434 = vpop.f32.mrf.mxu0
        %v2435 = vadd.f32 0.0, %v2434
        %2436 = vmatmul.f32.gmra.mxu0 %v2397
        %v2437 = vpop.f32.mrf.mxu0
        %v2438 = vadd.f32 0.0, %v2437
        %2439 = vmatmul.f32.gmra.mxu0 %v2400
        %v2440 = vpop.f32.mrf.mxu0
        %v2441 = vadd.f32 0.0, %v2440
        %2442 = vmatmul.f32.gmra.mxu0 %v2403
        %v2443 = vpop.f32.mrf.mxu0
        %v2444 = vadd.f32 0.0, %v2443
        %2445 = vmatmul.f32.gmra.mxu0 %v2406
        %v2446 = vpop.f32.mrf.mxu0
        %v2447 = vadd.f32 0.0, %v2446
        %2448 = vdwg.mxu0
        %v2449 = vadd.f32 %v2197, %v2426
        %v2450 = vadd.f32 %v2198, %v2429
        %v2451 = vadd.f32 %v2199, %v2432
        %v2452 = vadd.f32 %v2200, %v2435
        %v2453 = vadd.f32 %v2201, %v2438
        %v2454 = vadd.f32 %v2202, %v2441
        %v2455 = vadd.f32 %v2203, %v2444
        %v2456 = vadd.f32 %v2204, %v2447
        %v2457 = vmul.f32 %v2449, %v2449
        %v2458 = vmul.f32 %v2450, %v2450
        %v2459 = vmul.f32 %v2451, %v2451
        %v2460 = vmul.f32 %v2452, %v2452
        %v2461 = vmul.f32 %v2453, %v2453
        %v2462 = vmul.f32 %v2454, %v2454
        %v2463 = vmul.f32 %v2455, %v2455
        %v2464 = vmul.f32 %v2456, %v2456
        %v2465 = vsel %vm761, %v2457, 0.0
        %2466 = vadd.xlane.f32.xlu0 %v2465
        %v2467 = vpop.xlane.xlu0 %2466
        %v2468 = vsel %vm761, %v2458, 0.0
        %2469 = vadd.xlane.f32.xlu0 %v2468
        %v2470 = vpop.xlane.xlu0 %2469
        %v2471 = vsel %vm761, %v2459, 0.0
        %2472 = vadd.xlane.f32.xlu0 %v2471
        %v2473 = vpop.xlane.xlu0 %2472
        %v2474 = vsel %vm761, %v2460, 0.0
        %2475 = vadd.xlane.f32.xlu0 %v2474
        %v2476 = vpop.xlane.xlu0 %2475
        %v2477 = vsel %vm761, %v2461, 0.0
        %2478 = vadd.xlane.f32.xlu0 %v2477
        %v2479 = vpop.xlane.xlu0 %2478
        %v2480 = vsel %vm761, %v2462, 0.0
        %2481 = vadd.xlane.f32.xlu0 %v2480
        %v2482 = vpop.xlane.xlu0 %2481
        %v2483 = vsel %vm761, %v2463, 0.0
        %2484 = vadd.xlane.f32.xlu0 %v2483
        %v2485 = vpop.xlane.xlu0 %2484
        %v2486 = vsel %vm761, %v2464, 0.0
        %2487 = vadd.xlane.f32.xlu0 %v2486
        %v2488 = vpop.xlane.xlu0 %2487
        %v2489 = vmax.f32 %v2467, 1e-24
        %v2490 = vmax.f32 %v2470, 1e-24
        %v2491 = vmax.f32 %v2473, 1e-24
        %v2492 = vmax.f32 %v2476, 1e-24
        %v2493 = vmax.f32 %v2479, 1e-24
        %v2494 = vmax.f32 %v2482, 1e-24
        %v2495 = vmax.f32 %v2485, 1e-24
        %v2496 = vmax.f32 %v2488, 1e-24
        %v2497 = vrsqrt.pop %v2489
        %v2498 = vmul.f32 %v2497, %v2489
        %v2499 = vmul.f32 %v2498, %v2497
        %v2500 = vmul.f32 0.5, %v2499
        %v2501 = vsub.f32 1.5, %v2500
        %v2502 = vmul.f32 %v2497, %v2501
        %vm2503 = vweird.f32 %v2489
        %vm2504 = vweird.f32 %v2497
        %vm2505 = vmor %vm2503, %vm2504
        %v2506 = vsel %vm2505, %v2497, %v2502
        %v2507 = vrsqrt.pop %v2490
        %v2508 = vmul.f32 %v2507, %v2490
        %v2509 = vmul.f32 %v2508, %v2507
        %v2510 = vmul.f32 0.5, %v2509
        %v2511 = vsub.f32 1.5, %v2510
        %v2512 = vmul.f32 %v2507, %v2511
        %vm2513 = vweird.f32 %v2490
        %vm2514 = vweird.f32 %v2507
        %vm2515 = vmor %vm2513, %vm2514
        %v2516 = vsel %vm2515, %v2507, %v2512
        %v2517 = vrsqrt.pop %v2491
        %v2518 = vmul.f32 %v2517, %v2491
        %v2519 = vmul.f32 %v2518, %v2517
        %v2520 = vmul.f32 0.5, %v2519
        %v2521 = vsub.f32 1.5, %v2520
        %v2522 = vmul.f32 %v2517, %v2521
        %vm2523 = vweird.f32 %v2491
        %vm2524 = vweird.f32 %v2517
        %vm2525 = vmor %vm2523, %vm2524
        %v2526 = vsel %vm2525, %v2517, %v2522
        %v2527 = vrsqrt.pop %v2492
        %v2528 = vmul.f32 %v2527, %v2492
        %v2529 = vmul.f32 %v2528, %v2527
        %v2530 = vmul.f32 0.5, %v2529
        %v2531 = vsub.f32 1.5, %v2530
        %v2532 = vmul.f32 %v2527, %v2531
        %vm2533 = vweird.f32 %v2492
        %vm2534 = vweird.f32 %v2527
        %vm2535 = vmor %vm2533, %vm2534
        %v2536 = vsel %vm2535, %v2527, %v2532
        %v2537 = vrsqrt.pop %v2493
        %v2538 = vmul.f32 %v2537, %v2493
        %v2539 = vmul.f32 %v2538, %v2537
        %v2540 = vmul.f32 0.5, %v2539
        %v2541 = vsub.f32 1.5, %v2540
        %v2542 = vmul.f32 %v2537, %v2541
        %vm2543 = vweird.f32 %v2493
        %vm2544 = vweird.f32 %v2537
        %vm2545 = vmor %vm2543, %vm2544
        %v2546 = vsel %vm2545, %v2537, %v2542
        %v2547 = vrsqrt.pop %v2494
        %v2548 = vmul.f32 %v2547, %v2494
        %v2549 = vmul.f32 %v2548, %v2547
        %v2550 = vmul.f32 0.5, %v2549
        %v2551 = vsub.f32 1.5, %v2550
        %v2552 = vmul.f32 %v2547, %v2551
        %vm2553 = vweird.f32 %v2494
        %vm2554 = vweird.f32 %v2547
        %vm2555 = vmor %vm2553, %vm2554
        %v2556 = vsel %vm2555, %v2547, %v2552
        %v2557 = vrsqrt.pop %v2495
        %v2558 = vmul.f32 %v2557, %v2495
        %v2559 = vmul.f32 %v2558, %v2557
        %v2560 = vmul.f32 0.5, %v2559
        %v2561 = vsub.f32 1.5, %v2560
        %v2562 = vmul.f32 %v2557, %v2561
        %vm2563 = vweird.f32 %v2495
        %vm2564 = vweird.f32 %v2557
        %vm2565 = vmor %vm2563, %vm2564
        %v2566 = vsel %vm2565, %v2557, %v2562
        %v2567 = vrsqrt.pop %v2496
        %v2568 = vmul.f32 %v2567, %v2496
        %v2569 = vmul.f32 %v2568, %v2567
        %v2570 = vmul.f32 0.5, %v2569
        %v2571 = vsub.f32 1.5, %v2570
        %v2572 = vmul.f32 %v2567, %v2571
        %vm2573 = vweird.f32 %v2496
        %vm2574 = vweird.f32 %v2567
        %vm2575 = vmor %vm2573, %vm2574
        %v2576 = vsel %vm2575, %v2567, %v2572
        %v2577 = vmul.f32 %v2449, %v2506
        %v2578 = vmul.f32 %v2450, %v2516
        %v2579 = vmul.f32 %v2451, %v2526
        %v2580 = vmul.f32 %v2452, %v2536
        %v2581 = vmul.f32 %v2453, %v2546
        %v2582 = vmul.f32 %v2454, %v2556
        %v2583 = vmul.f32 %v2455, %v2566
        %v2584 = vmul.f32 %v2456, %v2576
        %v2586 = vperm.slane %v416, 0
        %v2588 = vmul.f32 %v2577, %v2586
        %v2589 = vmul.f32 %v2578, %v2586
        %v2590 = vmul.f32 %v2579, %v2586
        %v2591 = vmul.f32 %v2580, %v2586
        %v2592 = vmul.f32 %v2581, %v2586
        %v2593 = vmul.f32 %v2582, %v2586
        %v2594 = vmul.f32 %v2583, %v2586
        %v2595 = vmul.f32 %v2584, %v2586
        %2596 = vst.msk [vmem:[%s413] sm:$0xff] %vm761, %v2588
        %2597 = vst.msk [vmem:[%s413 + $0x8] sm:$0xff] %vm761, %v2589
        %2598 = vst.msk [vmem:[%s413 + $0x10] sm:$0xff] %vm761, %v2590
        %2599 = vst.msk [vmem:[%s413 + $0x18] sm:$0xff] %vm761, %v2591
        %2600 = vst.msk [vmem:[%s413 + $0x20] sm:$0xff] %vm761, %v2592
        %2601 = vst.msk [vmem:[%s413 + $0x28] sm:$0xff] %vm761, %v2593
        %2602 = vst.msk [vmem:[%s413 + $0x30] sm:$0xff] %vm761, %v2594
        %2603 = vst.msk [vmem:[%s413 + $0x38] sm:$0xff] %vm761, %v2595
      $region64: #{tpu_custom_call.1} parent=55 // pred_fallthru
        _
      %s2604 = smul.u32 8, %s26
      %p2605 = scmp.lt.s32.totalorder %s25, 1
      %s2606 = scalar_select %p2605, %s25, 1
      %p2607 = scmp.lt.s32.totalorder %s2604, 31
      %s2608 = scalar_select %p2607, %s2604, 31
      %s2609 = smul.addr %s2606, 32
      %s2610 = sadd.s32 %s2608, %s2609
      %s2611 = smul.addr %s2610, 8
      %s2612 = scalar_lea.vmem %s9, %s2611
      // Predicated region
      $region65: #{tpu_custom_call.1} parent=55 // pred_check
        %p2613 = pneg %p262
      $region66: #{tpu_custom_call.1} parent=55 // pred_check_branch
        %2615 = sbr.rel (%p2613) target = $region68
      $region67: #{tpu_custom_call.1} parent=55 // pred_region
        %s2616 = smul.u32 8, %s26
      $region68: #{tpu_custom_call.1} parent=55 // pred_fallthru
        _
    $region56: #{tpu_custom_call.1} parent=5 // pred_fallthru
      _
    %p2617 = scmp.le.s32.totalorder 2, %s15
    // Predicated region
    $region69: #{tpu_custom_call.1} parent=5 // pred_check
      %p2618 = pneg %p2617
    $region70: #{tpu_custom_call.1} parent=5 // pred_check_branch
      %2620 = sbr.rel (%p2618) target = $region72
    $region71: #{tpu_custom_call.1} parent=5 // pred_region
      %s2621 = ssub.s32 %s15, 2
      // Predicated region
      $region73: #{tpu_custom_call.1} parent=71 // pred_check
        %p2622 = pneg %p268
      $region74: #{tpu_custom_call.1} parent=71 // pred_check_branch
        %2624 = sbr.rel (%p2622) target = $region76
      $region75: #{tpu_custom_call.1} parent=71 // pred_region
        %s2625 = smul.u32 8, %s29
        %p2626 = scmp.lt.s32.totalorder %s28, 1
        %s2627 = scalar_select %p2626, %s28, 1
        %p2628 = scmp.lt.s32.totalorder %s2625, 31
        %s2629 = scalar_select %p2628, %s2625, 31
        %s2630 = smul.addr %s2627, 32
        %s2631 = sadd.s32 %s2629, %s2630
        %s2632 = smul.addr %s2631, 8
        %s2633 = scalar_lea.vmem %s9, %s2632
      $region76: #{tpu_custom_call.1} parent=71 // pred_fallthru
        _
    $region72: #{tpu_custom_call.1} parent=5 // pred_fallthru
      _
  $region6: #{tpu_custom_call.1} parent=0 // loop_footer
    %s19 = sadd.s32 1, %s15
  $region7: #{tpu_custom_call.1} parent=0 // loop_footer_branch
    %14 = sbr.rel target = $region3
  $region8: #{tpu_custom_call.1} parent=0 // loop_exit
    _

</llo_original>
